<compile_context>
chip_gen: v5e
topology: v5e:2x2
jax: 0.10.0
libtpu: 0.0.40
codegen_flags: <defaults>
</compile_context>

<pallas_src>
import math
import functools

import jax
import jax.numpy as jnp
from jax.experimental import pallas as pl
from jax.experimental.pallas import tpu as pltpu

MXU_DTYPE = jnp.bfloat16          # matmul-input / attention-activation dtype
LN_EPS = 1e-5
MASK_VALUE = -1e30                # additive key-padding bias, kept in float32


def _tpu_kind():
    try:
        return jax.devices()[0].device_kind.lower()
    except Exception:
        return ""


_KIND = _tpu_kind()
# v4 / v5e / v6e have 128 MiB VMEM per core; v7x only 64 MiB -> stay conservative there.
_BIG_VMEM = any(g in _KIND for g in ("v4", "v5", "v6"))
VMEM_LIMIT = (64 if _BIG_VMEM else 32) * 1024 * 1024
LM_HEAD_TM = 512 if _BIG_VMEM else 256
LM_HEAD_TN = 1024 if _BIG_VMEM else 512
FFN_TM = 256 if _BIG_VMEM else 128


def _round_up(x, m):
    return ((x + m - 1) // m) * m


def _choose_tile(dim, target, align):
    """Largest tile <= target that is a multiple of `align` and divides `dim`;
    falls back to the full dimension (always a legal BlockSpec block)."""
    if dim <= target:
        return dim
    t = (min(target, dim) // align) * align
    while t >= align:
        if dim % t == 0:
            return t
        t -= align
    return dim


def _compiler_params(semantics):
    return pltpu.CompilerParams(dimension_semantics=semantics,
                                vmem_limit_bytes=VMEM_LIMIT)


# ----------------------------------------------------------------------------
# Linear with the whole (K, N) weight resident in VMEM (used for the fused QKV
# projection: weight is small, grid-invariant block -> DMA'd from HBM once).
# ----------------------------------------------------------------------------

def _linear_kernel(x_ref, w_ref, b_ref, o_ref):
    acc = jnp.dot(x_ref[...].astype(MXU_DTYPE), w_ref[...],
                  preferred_element_type=jnp.float32)
    o_ref[...] = (acc + b_ref[...]).astype(o_ref.dtype)


def linear_resident_w(x2d, w_bf16, b, *, tm=256, out_dtype=None):
    M, K = x2d.shape
    N = w_bf16.shape[1]
    TM = _choose_tile(M, tm, 8)
    out_dtype = out_dtype or x2d.dtype
    cost = pl.CostEstimate(
        flops=2 * M * K * N, transcendentals=0,
        bytes_accessed=M * K * x2d.dtype.itemsize + K * N * 2 + N * 4
        + M * N * jnp.dtype(out_dtype).itemsize)
    return pl.pallas_call(
        _linear_kernel,
        out_shape=jax.ShapeDtypeStruct((M, N), out_dtype),
        grid=(M // TM,),
        in_specs=[
            pl.BlockSpec((TM, K), lambda i: (i, 0)),
            pl.BlockSpec((K, N), lambda i: (0, 0)),     # full bf16 weight, grid-invariant
            pl.BlockSpec((1, N), lambda i: (0, 0)),
        ],
        out_specs=pl.BlockSpec((TM, N), lambda i: (i, 0)),
        compiler_params=_compiler_params(("parallel",)),
        cost_estimate=cost,
    )(x2d, w_bf16, b.reshape(1, N))


# ----------------------------------------------------------------------------
# LM head: (vocab_tiles, row_tiles) grid with row tiles innermost so each vocab
# tile of the (bf16) weight is streamed from HBM exactly once.
# ----------------------------------------------------------------------------

def _lm_head_kernel(x_ref, w_ref, b_ref, o_ref):
    acc = jnp.dot(x_ref[...], w_ref[...], preferred_element_type=jnp.float32)
    o_ref[...] = (acc + b_ref[...]).astype(o_ref.dtype)


def lm_head(x2d_bf16, w_bf16, b, *, tm=LM_HEAD_TM, tn=LM_HEAD_TN):
    M, K = x2d_bf16.shape
    N = w_bf16.shape[1]
    TM = min(tm, _round_up(M, 8))
    TN = min(tn, _round_up(N, 128))
    M_pad = _round_up(M, TM)
    N_pad = _round_up(N, TN)
    if M_pad != M:                      # pad rows so row tiles stay sublane-aligned
        x2d_bf16 = jnp.pad(x2d_bf16, ((0, M_pad - M), (0, 0)))
    if N_pad != N:                      # pad vocab so output stores stay lane-dense
        w_bf16 = jnp.pad(w_bf16, ((0, 0), (0, N_pad - N)))
        b = jnp.pad(b, (0, N_pad - N))
    n_col_tiles = N_pad // TN
    cost = pl.CostEstimate(
        flops=2 * M_pad * K * N_pad, transcendentals=0,
        bytes_accessed=M_pad * K * 2 * n_col_tiles + K * N_pad * 2
        + N_pad * 4 + M_pad * N_pad * 4)
    out = pl.pallas_call(
        _lm_head_kernel,
        out_shape=jax.ShapeDtypeStruct((M_pad, N_pad), jnp.float32),
        # vocab tiles on the OUTER axis, row tiles INNER: the (K, TN) weight block
        # index is constant across the inner axis -> fetched once per vocab tile.
        grid=(n_col_tiles, M_pad // TM),
        in_specs=[
            pl.BlockSpec((TM, K), lambda j, i: (i, 0)),
            pl.BlockSpec((K, TN), lambda j, i: (0, j)),
            pl.BlockSpec((1, TN), lambda j, i: (0, j)),
        ],
        out_specs=pl.BlockSpec((TM, TN), lambda j, i: (i, j)),
        compiler_params=_compiler_params(("parallel", "parallel")),
        cost_estimate=cost,
    )(x2d_bf16, w_bf16, b.reshape(1, N_pad))
    return out[:M, :N]


# ----------------------------------------------------------------------------
# Fused out-projection + residual add + LayerNorm1
# ----------------------------------------------------------------------------

def _proj_add_ln_kernel(a_ref, w_ref, b_ref, r_ref, g_ref, bb_ref, o_ref):
    y = jnp.dot(a_ref[...].astype(MXU_DTYPE), w_ref[...],
                preferred_element_type=jnp.float32) + b_ref[...]
    y = y + r_ref[...].astype(jnp.float32)                       # residual (f32)
    mu = jnp.mean(y, axis=-1, keepdims=True)
    var = jnp.mean(jnp.square(y - mu), axis=-1, keepdims=True)
    o_ref[...] = ((y - mu) * jax.lax.rsqrt(var + LN_EPS) * g_ref[...]
                  + bb_ref[...]).astype(o_ref.dtype)


def proj_add_layernorm(a2d, w_bf16, b, res2d, gamma, beta, *, tm=256):
    M, D = a2d.shape
    TM = _choose_tile(M, tm, 8)
    cost = pl.CostEstimate(
        flops=2 * M * D * D + 10 * M * D, transcendentals=M,
        bytes_accessed=M * D * (a2d.dtype.itemsize + res2d.dtype.itemsize + 4)
        + D * D * 2 + 4 * D * 4)
    return pl.pallas_call(
        _proj_add_ln_kernel,
        out_shape=jax.ShapeDtypeStruct((M, D), res2d.dtype),
        grid=(M // TM,),
        in_specs=[
            pl.BlockSpec((TM, D), lambda i: (i, 0)),
            pl.BlockSpec((D, D), lambda i: (0, 0)),       # bf16 weight stays resident
            pl.BlockSpec((1, D), lambda i: (0, 0)),
            pl.BlockSpec((TM, D), lambda i: (i, 0)),
            pl.BlockSpec((1, D), lambda i: (0, 0)),
            pl.BlockSpec((1, D), lambda i: (0, 0)),
        ],
        out_specs=pl.BlockSpec((TM, D), lambda i: (i, 0)),
        compiler_params=_compiler_params(("parallel",)),
        cost_estimate=cost,
    )(a2d, w_bf16, b.reshape(1, D), res2d, gamma.reshape(1, D), beta.reshape(1, D))


# ----------------------------------------------------------------------------
# Fused FFN (w1 -> ReLU -> w2) + residual add + LayerNorm2
# ----------------------------------------------------------------------------

def _ffn_add_ln_kernel(x_ref, w1_ref, b1_ref, w2_ref, b2_ref, g_ref, bb_ref, o_ref):
    x = x_ref[...]
    h = jnp.dot(x.astype(MXU_DTYPE), w1_ref[...],
                preferred_element_type=jnp.float32) + b1_ref[...]
    h = jnp.maximum(h, 0.0)                                      # ReLU epilogue (f32)
    y = jnp.dot(h.astype(MXU_DTYPE), w2_ref[...],
                preferred_element_type=jnp.float32) + b2_ref[...]
    y = y + x.astype(jnp.float32)                                # residual (f32)
    mu = jnp.mean(y, axis=-1, keepdims=True)
    var = jnp.mean(jnp.square(y - mu), axis=-1, keepdims=True)
    o_ref[...] = ((y - mu) * jax.lax.rsqrt(var + LN_EPS) * g_ref[...]
                  + bb_ref[...]).astype(o_ref.dtype)


def ffn_add_layernorm(x2d, w1_bf16, b1, w2_bf16, b2, gamma, beta, *, tm=FFN_TM):
    M, D = x2d.shape
    F = w1_bf16.shape[1]
    TM = _choose_tile(M, tm, 8)
    cost = pl.CostEstimate(
        flops=4 * M * D * F + 2 * M * F + 10 * M * D, transcendentals=M,
        bytes_accessed=M * D * 8 + 2 * D * F * 2 + (F + 3 * D) * 4)
    return pl.pallas_call(
        _ffn_add_ln_kernel,
        out_shape=jax.ShapeDtypeStruct((M, D), x2d.dtype),
        grid=(M // TM,),
        in_specs=[
            pl.BlockSpec((TM, D), lambda i: (i, 0)),
            pl.BlockSpec((D, F), lambda i: (0, 0)),       # bf16 weights stay resident
            pl.BlockSpec((1, F), lambda i: (0, 0)),
            pl.BlockSpec((F, D), lambda i: (0, 0)),
            pl.BlockSpec((1, D), lambda i: (0, 0)),
            pl.BlockSpec((1, D), lambda i: (0, 0)),
            pl.BlockSpec((1, D), lambda i: (0, 0)),
        ],
        out_specs=pl.BlockSpec((TM, D), lambda i: (i, 0)),
        compiler_params=_compiler_params(("parallel",)),
        cost_estimate=cost,
    )(x2d, w1_bf16, b1.reshape(1, F), w2_bf16, b2.reshape(1, D),
      gamma.reshape(1, D), beta.reshape(1, D))


# ----------------------------------------------------------------------------
# Multi-head attention on a (batch, head-group) grid.  The fused QKV tensor is
# laid out per head as [Q_h | K_h | V_h]; the softmax scale is pre-folded into
# the Q weights, so the kernel does QK^T + bias -> softmax -> PV per head and
# one lane-dense store per head group.
# ----------------------------------------------------------------------------

def _num_head_groups(d_model, nhead):
    # max number of groups such that each group's output width is a multiple of
    # 128 lanes (lane-dense blocks); fall back to a single full-width group.
    for n_g in range(nhead, 0, -1):
        if nhead % n_g == 0 and (d_model // n_g) % 128 == 0:
            return n_g
    return 1


def _mha_kernel(qkv_ref, bias_ref, o_ref, *, heads_per_group, d_head):
    # qkv_ref: (1, S, 3*W) per-head [Q|K|V] blocks, bf16.  bias_ref: (1, 1, S) f32.
    qkv = qkv_ref[0]                          # (S, 3*W)
    bias = bias_ref[0]                        # (1, S) additive key-padding bias
    outs = []
    for h in range(heads_per_group):          # static unroll over heads in group
        base = h * 3 * d_head
        q = qkv[:, base:base + d_head]
        k = qkv[:, base + d_head:base + 2 * d_head]
        v = qkv[:, base + 2 * d_head:base + 3 * d_head]
        # contract on the last axes of both operands -> no explicit k.T relayout
        s = jax.lax.dot_general(q, k, dimension_numbers=(((1,), (1,)), ((), ())),
                                preferred_element_type=jnp.float32)
        s = s + bias                          # 1/sqrt(d_head) already folded into q
        s = s - jnp.max(s, axis=-1, keepdims=True)
        p = jnp.exp(s)
        p = p * pl.reciprocal(jnp.sum(p, axis=-1, keepdims=True), approx=True)
        outs.append(jnp.dot(p.astype(MXU_DTYPE), v,
                            preferred_element_type=jnp.float32))
    out = outs[0] if len(outs) == 1 else jnp.concatenate(outs, axis=-1)
    o_ref[0] = out.astype(o_ref.dtype)        # one lane-dense store per head group


def mha_attention(qkv, bias, nhead):
    # TODO(synk): flash-style K/V grid axis (online softmax) for long S so the (S,S)
    #             score tile never materializes in VMEM.
    B, S, D3 = qkv.shape
    D = D3 // 3
    Dh = D // nhead
    n_g = _num_head_groups(D, nhead)
    W = D // n_g
    heads_per_group = W // Dh
    cost = pl.CostEstimate(
        flops=4 * B * S * S * D + 6 * B * nhead * S * S,
        transcendentals=B * nhead * S * S,
        bytes_accessed=B * S * 3 * D * 2 + B * S * 4 + B * S * D * 2)
    return pl.pallas_call(
        functools.partial(_mha_kernel, heads_per_group=heads_per_group, d_head=Dh),
        out_shape=jax.ShapeDtypeStruct((B, S, D), MXU_DTYPE),
        grid=(B, n_g),
        in_specs=[
            pl.BlockSpec((1, S, 3 * W), lambda b, g: (b, 0, g)),
            pl.BlockSpec((1, 1, S), lambda b, g: (b, 0, 0)),
        ],
        out_specs=pl.BlockSpec((1, S, W), lambda b, g: (b, 0, g)),
        compiler_params=_compiler_params(("parallel", "parallel")),
        cost_estimate=cost,
    )(qkv, bias)


# ----------------------------------------------------------------------------
# Parameters: torch-like init + a prepare step that folds the attention scale,
# interleaves the QKV weight per head, and pre-casts matmul weights to bf16.
# ----------------------------------------------------------------------------

def sinusoidal_pe(seq_len, d_model):
    pos = jnp.arange(seq_len, dtype=jnp.float32)[:, None]
    div = jnp.exp(
        jnp.arange(0, d_model, 2, dtype=jnp.float32) * (-math.log(10000.0) / d_model)
    )
    pe = jnp.zeros((seq_len, d_model), jnp.float32)
    pe = pe.at[:, 0::2].set(jnp.sin(pos * div))
    pe = pe.at[:, 1::2].set(jnp.cos(pos * div))
    return pe


def init_params(key, d_vocab, d_model, nhead, d_ff, num_layers):
    def dense(k, fan_in, fan_out):
        kw, kb = jax.random.split(k)
        lim = 1.0 / math.sqrt(fan_in)
        w = jax.random.uniform(kw, (fan_in, fan_out), jnp.float32, -lim, lim)
        b = jax.random.uniform(kb, (fan_out,), jnp.float32, -lim, lim)
        return w, b

    keys = jax.random.split(key, num_layers + 2)
    params = {
        "emb": jax.random.normal(keys[0], (d_vocab, d_model), jnp.float32) * 0.02,
        "layers": [],
    }
    for li in range(num_layers):
        lk = jax.random.split(keys[1 + li], 6)
        wq, bq = dense(lk[0], d_model, d_model)
        wk, bk = dense(lk[1], d_model, d_model)
        wv, bv = dense(lk[2], d_model, d_model)
        wo, bo = dense(lk[3], d_model, d_model)
        w1, b1 = dense(lk[4], d_model, d_ff)
        w2, b2 = dense(lk[5], d_ff, d_model)
        params["layers"].append(dict(
            wq=wq, bq=bq, wk=wk, bk=bk, wv=wv, bv=bv, wo=wo, bo=bo,
            w1=w1, b1=b1, w2=w2, b2=b2,
            ln1_g=jnp.ones((d_model,), jnp.float32),
            ln1_b=jnp.zeros((d_model,), jnp.float32),
            ln2_g=jnp.ones((d_model,), jnp.float32),
            ln2_b=jnp.zeros((d_model,), jnp.float32),
        ))
    wf, bf = dense(keys[-1], d_model, d_vocab)
    params["fc_w"], params["fc_b"] = wf, bf
    return params


def prepare_params(params, nhead):
    """Fold the attention scale into Q, interleave QKV per head, pre-cast matmul
    weights to bf16 (biases / LN params stay f32)."""
    d_model = params["emb"].shape[1]
    Dh = d_model // nhead
    scale = 1.0 / math.sqrt(Dh)
    out = {"emb": params["emb"],
           "fc_w": params["fc_w"].astype(MXU_DTYPE),
           "fc_b": params["fc_b"],
           "layers": []}
    for p in params["layers"]:
        wq = (p["wq"] * scale).reshape(d_model, nhead, Dh)   # fold softmax scale
        wk = p["wk"].reshape(d_model, nhead, Dh)
        wv = p["wv"].reshape(d_model, nhead, Dh)
        w_qkv = jnp.concatenate([wq, wk, wv], axis=-1).reshape(d_model, 3 * d_model)
        bq = (p["bq"] * scale).reshape(nhead, Dh)
        bk = p["bk"].reshape(nhead, Dh)
        bv = p["bv"].reshape(nhead, Dh)
        b_qkv = jnp.concatenate([bq, bk, bv], axis=-1).reshape(3 * d_model)
        out["layers"].append(dict(
            w_qkv=w_qkv.astype(MXU_DTYPE), b_qkv=b_qkv,
            wo=p["wo"].astype(MXU_DTYPE), bo=p["bo"],
            w1=p["w1"].astype(MXU_DTYPE), b1=p["b1"],
            w2=p["w2"].astype(MXU_DTYPE), b2=p["b2"],
            ln1_g=p["ln1_g"], ln1_b=p["ln1_b"],
            ln2_g=p["ln2_g"], ln2_b=p["ln2_b"],
        ))
    return out


# ----------------------------------------------------------------------------
# Model forward
# ----------------------------------------------------------------------------

def encoder_layer(a, p, bias, nhead):
    # a: (B, S, D) f32 activations; bias: (B, 1, S) additive key-padding bias.
    B, S, D = a.shape
    a2 = a.reshape(B * S, D)
    qkv = linear_resident_w(a2, p["w_qkv"], p["b_qkv"], out_dtype=MXU_DTYPE)  # fused QKV
    attn = mha_attention(qkv.reshape(B, S, 3 * D), bias, nhead)
    h = proj_add_layernorm(attn.reshape(B * S, D), p["wo"], p["bo"],
                           a2, p["ln1_g"], p["ln1_b"])             # LN1(x + attn)
    out = ffn_add_layernorm(h, p["w1"], p["b1"], p["w2"], p["b2"],
                            p["ln2_g"], p["ln2_b"])                # LN2(h + ffn)
    return out.reshape(B, S, D)


def ponart_forward(params, x_ids, nhead, padding_mask=None):
    # x_ids: (S, B) int token ids (PyTorch (seq, batch) layout).
    S, B = x_ids.shape
    d_model = params["emb"].shape[1]
    if padding_mask is None:
        padding_mask = (x_ids == 0).T                              # (B, S), True = pad

    # Embedding gather + scale + sinusoidal PE (dropout = identity).  Activations
    # are kept batch-major (B, S, D) so attention can slice heads in-kernel without
    # inter-kernel transposes.
    h = params["emb"][x_ids.T] * math.sqrt(d_model)                # (B, S, D) f32
    h = h + sinusoidal_pe(S, d_model)[None, :, :]

    bias = jnp.where(padding_mask, MASK_VALUE, 0.0).astype(jnp.float32)
    bias = bias[:, None, :]                                        # (B, 1, S)

    for layer_params in params["layers"]:
        h = encoder_layer(h, layer_params, bias, nhead)

    # Transpose the SMALL (B,S,D) activation to (S,B,D) before the LM head so the
    # kernel emits logits directly in the PyTorch (S, B, V) layout (no V-sized
    # relayout afterwards); cast to bf16 so the streamed LM-head rows are half-size.
    h_sb = jnp.transpose(h, (1, 0, 2)).reshape(S * B, d_model).astype(MXU_DTYPE)
    logits = lm_head(h_sb, params["fc_w"], params["fc_b"])
    return logits.reshape(S, B, -1)                                # (S, B, d_vocab)


# ----------------------------------------------------------------------------
if __name__ == "__main__":
    SEQ, BATCH = 8, 2
    D_VOCAB, D_MODEL, NHEAD, D_FF, N_LAYERS = 128, 32, 4, 64, 2

    key = jax.random.PRNGKey(0)
    k_param, k_ids = jax.random.split(key)

    raw_params = init_params(k_param, D_VOCAB, D_MODEL, NHEAD, D_FF, N_LAYERS)
    params = prepare_params(raw_params, NHEAD)

    # token ids (seq, batch); a couple of pad (=0) tokens to exercise the mask
    x = jax.random.randint(k_ids, (SEQ, BATCH), 1, D_VOCAB, dtype=jnp.int32)
    x = x.at[SEQ - 2:, 0].set(0)

    fwd = jax.jit(functools.partial(ponart_forward, nhead=NHEAD))
    out = jax.block_until_ready(fwd(params, x))

    assert out.shape == (SEQ, BATCH, D_VOCAB), out.shape
    assert bool(jnp.all(jnp.isfinite(out)))
    print("KERNEL_OK")
</pallas_src>

<mosaic_0001>
module attributes {stable_mosaic.version = 11 : i64} {
  func.func @_linear_kernel(%arg0: i32, %arg1: memref<16x32xf32, #tpu.memory_space<vmem>>, %arg2: memref<32x96xbf16, #tpu.memory_space<vmem>>, %arg3: memref<1x96xf32, #tpu.memory_space<vmem>>, %arg4: memref<16x96xbf16, #tpu.memory_space<vmem>>) attributes {dimension_semantics = [#tpu.dimension_semantics<parallel>], iteration_bounds = array<i64: 1>, scalar_prefetch = 0 : i64, scratch_operands = 0 : i64, tpu.core_type = #tpu.core_type<tc>, window_params = [{transform_indices = @transform_0, window_bounds = array<i64: 16, 32>}, {pipeline_mode = #tpu.pipeline_mode<synchronous>, transform_indices = @transform_1, window_bounds = array<i64: 32, 96>}, {pipeline_mode = #tpu.pipeline_mode<synchronous>, transform_indices = @transform_2, window_bounds = array<i64: 1, 96>}, {transform_indices = @transform_3, window_bounds = array<i64: 16, 96>}]} {
    %c0 = arith.constant 0 : index
    %c0_0 = arith.constant 0 : index
    %0 = vector.load %arg1[%c0, %c0_0] : memref<16x32xf32, #tpu.memory_space<vmem>>, vector<16x32xf32>
    %1 = arith.truncf %0 : vector<16x32xf32> to vector<16x32xbf16>
    %c0_1 = arith.constant 0 : index
    %c0_2 = arith.constant 0 : index
    %2 = vector.load %arg2[%c0_1, %c0_2] : memref<32x96xbf16, #tpu.memory_space<vmem>>, vector<32x96xbf16>
    %cst = arith.constant dense<0.000000e+00> : vector<16x96xf32>
    %3 = tpu.matmul %1, %2, %cst {dimension_numbers = #tpu.dot_dimension_numbers<[1], [0], [0], [1], [0, 0, 1, 1], [], []>} : vector<16x32xbf16>, vector<32x96xbf16>, vector<16x96xf32> -> vector<16x96xf32>
    %c0_3 = arith.constant 0 : index
    %c0_4 = arith.constant 0 : index
    %4 = vector.load %arg3[%c0_3, %c0_4] : memref<1x96xf32, #tpu.memory_space<vmem>>, vector<1x96xf32>
    %5 = vector.broadcast %4 : vector<1x96xf32> to vector<16x96xf32>
    %6 = arith.addf %3, %5 : vector<16x96xf32>
    %7 = arith.truncf %6 : vector<16x96xf32> to vector<16x96xbf16>
    %c0_5 = arith.constant 0 : index
    %c0_6 = arith.constant 0 : index
    %8 = vector.load %arg4[%c0_5, %c0_6] : memref<16x96xbf16, #tpu.memory_space<vmem>>, vector<16x96xbf16>
    tpu.vector_store %arg4[%c0_5, %c0_6], %7 {strides = array<i32>} : memref<16x96xbf16, #tpu.memory_space<vmem>>, vector<16x96xbf16>,
    return
  }
  func.func @transform_0(%arg0: i32) -> (i32, i32) {
    %c0_i32 = arith.constant 0 : i32
    %c0_i32_0 = arith.constant 0 : i32
    return %arg0, %c0_i32 : i32, i32
  }
  func.func @transform_1(%arg0: i32) -> (i32, i32) {
    %c0_i32 = arith.constant 0 : i32
    %c0_i32_0 = arith.constant 0 : i32
    %c0_i32_1 = arith.constant 0 : i32
    return %c0_i32, %c0_i32_0 : i32, i32
  }
  func.func @transform_2(%arg0: i32) -> (i32, i32) {
    %c0_i32 = arith.constant 0 : i32
    %c0_i32_0 = arith.constant 0 : i32
    %c0_i32_1 = arith.constant 0 : i32
    return %c0_i32, %c0_i32_0 : i32, i32
  }
  func.func @transform_3(%arg0: i32) -> (i32, i32) {
    %c0_i32 = arith.constant 0 : i32
    %c0_i32_0 = arith.constant 0 : i32
    return %arg0, %c0_i32 : i32, i32
  }
}

module attributes {stable_mosaic.version = 11 : i64} {
  func.func @_mha_kernel(%arg0: i32, %arg1: i32, %arg2: memref<1x8x96xbf16, #tpu.memory_space<vmem>>, %arg3: memref<1x1x8xf32, #tpu.memory_space<vmem>>, %arg4: memref<1x8x32xbf16, #tpu.memory_space<vmem>>) attributes {dimension_semantics = [#tpu.dimension_semantics<parallel>, #tpu.dimension_semantics<parallel>], iteration_bounds = array<i64: 2, 1>, scalar_prefetch = 0 : i64, scratch_operands = 0 : i64, tpu.core_type = #tpu.core_type<tc>, window_params = [{transform_indices = @transform_0, window_bounds = array<i64: 1, 8, 96>}, {transform_indices = @transform_1, window_bounds = array<i64: 1, 1, 8>}, {transform_indices = @transform_2, window_bounds = array<i64: 1, 8, 32>}]} {
    %c0 = arith.constant 0 : index
    %c0_0 = arith.constant 0 : index
    %c0_1 = arith.constant 0 : index
    %0 = vector.load %arg2[%c0, %c0_0, %c0_1] : memref<1x8x96xbf16, #tpu.memory_space<vmem>>, vector<1x8x96xbf16>
    %1 = vector.shape_cast %0 : vector<1x8x96xbf16> to vector<8x96xbf16>
    %c0_2 = arith.constant 0 : index
    %c0_3 = arith.constant 0 : index
    %c0_4 = arith.constant 0 : index
    %2 = vector.load %arg3[%c0_2, %c0_3, %c0_4] : memref<1x1x8xf32, #tpu.memory_space<vmem>>, vector<1x1x8xf32>
    %3 = vector.shape_cast %2 : vector<1x1x8xf32> to vector<1x8xf32>
    %4 = vector.extract_strided_slice %1 {offsets = [0, 0], sizes = [8, 8], strides = [1, 1]} : vector<8x96xbf16> to vector<8x8xbf16>
    %5 = vector.extract_strided_slice %1 {offsets = [0, 8], sizes = [8, 8], strides = [1, 1]} : vector<8x96xbf16> to vector<8x8xbf16>
    %6 = vector.extract_strided_slice %1 {offsets = [0, 16], sizes = [8, 8], strides = [1, 1]} : vector<8x96xbf16> to vector<8x8xbf16>
    %cst = arith.constant dense<0.000000e+00> : vector<8x8xf32>
    %7 = tpu.matmul %4, %5, %cst {dimension_numbers = #tpu.dot_dimension_numbers<[1], [1], [0], [0], [0, 0, 1, 0], [], []>} : vector<8x8xbf16>, vector<8x8xbf16>, vector<8x8xf32> -> vector<8x8xf32>
    %8 = vector.broadcast %3 : vector<1x8xf32> to vector<8x8xf32>
    %9 = arith.addf %7, %8 : vector<8x8xf32>
    %cst_5 = arith.constant dense<0xFF800000> : vector<8xf32>
    %10 = vector.multi_reduction <maximumf>, %9, %cst_5 [1] : vector<8x8xf32> to vector<8xf32>
    %11 = vector.shape_cast %10 : vector<8xf32> to vector<8x1xf32>
    %12 = vector.broadcast %11 : vector<8x1xf32> to vector<8x8xf32>
    %13 = arith.subf %9, %12 : vector<8x8xf32>
    %14 = math.exp %13 : vector<8x8xf32>
    %cst_6 = arith.constant dense<0.000000e+00> : vector<8xf32>
    %15 = vector.multi_reduction <add>, %14, %cst_6 [1] : vector<8x8xf32> to vector<8xf32>
    %16 = vector.shape_cast %15 : vector<8xf32> to vector<8x1xf32>
    %17 = tpu.reciprocal %16 {approx = true} : vector<8x1xf32> -> vector<8x1xf32>
    %18 = vector.broadcast %17 : vector<8x1xf32> to vector<8x8xf32>
    %19 = arith.mulf %14, %18 : vector<8x8xf32>
    %20 = arith.truncf %19 : vector<8x8xf32> to vector<8x8xbf16>
    %cst_7 = arith.constant dense<0.000000e+00> : vector<8x8xf32>
    %21 = tpu.matmul %20, %6, %cst_7 {dimension_numbers = #tpu.dot_dimension_numbers<[1], [0], [0], [1], [0, 0, 1, 1], [], []>} : vector<8x8xbf16>, vector<8x8xbf16>, vector<8x8xf32> -> vector<8x8xf32>
    %22 = vector.extract_strided_slice %1 {offsets = [0, 24], sizes = [8, 8], strides = [1, 1]} : vector<8x96xbf16> to vector<8x8xbf16>
    %23 = vector.extract_strided_slice %1 {offsets = [0, 32], sizes = [8, 8], strides = [1, 1]} : vector<8x96xbf16> to vector<8x8xbf16>
    %24 = vector.extract_strided_slice %1 {offsets = [0, 40], sizes = [8, 8], strides = [1, 1]} : vector<8x96xbf16> to vector<8x8xbf16>
    %cst_8 = arith.constant dense<0.000000e+00> : vector<8x8xf32>
    %25 = tpu.matmul %22, %23, %cst_8 {dimension_numbers = #tpu.dot_dimension_numbers<[1], [1], [0], [0], [0, 0, 1, 0], [], []>} : vector<8x8xbf16>, vector<8x8xbf16>, vector<8x8xf32> -> vector<8x8xf32>
    %26 = vector.broadcast %3 : vector<1x8xf32> to vector<8x8xf32>
    %27 = arith.addf %25, %26 : vector<8x8xf32>
    %cst_9 = arith.constant dense<0xFF800000> : vector<8xf32>
    %28 = vector.multi_reduction <maximumf>, %27, %cst_9 [1] : vector<8x8xf32> to vector<8xf32>
    %29 = vector.shape_cast %28 : vector<8xf32> to vector<8x1xf32>
    %30 = vector.broadcast %29 : vector<8x1xf32> to vector<8x8xf32>
    %31 = arith.subf %27, %30 : vector<8x8xf32>
    %32 = math.exp %31 : vector<8x8xf32>
    %cst_10 = arith.constant dense<0.000000e+00> : vector<8xf32>
    %33 = vector.multi_reduction <add>, %32, %cst_10 [1] : vector<8x8xf32> to vector<8xf32>
    %34 = vector.shape_cast %33 : vector<8xf32> to vector<8x1xf32>
    %35 = tpu.reciprocal %34 {approx = true} : vector<8x1xf32> -> vector<8x1xf32>
    %36 = vector.broadcast %35 : vector<8x1xf32> to vector<8x8xf32>
    %37 = arith.mulf %32, %36 : vector<8x8xf32>
    %38 = arith.truncf %37 : vector<8x8xf32> to vector<8x8xbf16>
    %cst_11 = arith.constant dense<0.000000e+00> : vector<8x8xf32>
    %39 = tpu.matmul %38, %24, %cst_11 {dimension_numbers = #tpu.dot_dimension_numbers<[1], [0], [0], [1], [0, 0, 1, 1], [], []>} : vector<8x8xbf16>, vector<8x8xbf16>, vector<8x8xf32> -> vector<8x8xf32>
    %40 = vector.extract_strided_slice %1 {offsets = [0, 48], sizes = [8, 8], strides = [1, 1]} : vector<8x96xbf16> to vector<8x8xbf16>
    %41 = vector.extract_strided_slice %1 {offsets = [0, 56], sizes = [8, 8], strides = [1, 1]} : vector<8x96xbf16> to vector<8x8xbf16>
    %42 = vector.extract_strided_slice %1 {offsets = [0, 64], sizes = [8, 8], strides = [1, 1]} : vector<8x96xbf16> to vector<8x8xbf16>
    %cst_12 = arith.constant dense<0.000000e+00> : vector<8x8xf32>
    %43 = tpu.matmul %40, %41, %cst_12 {dimension_numbers = #tpu.dot_dimension_numbers<[1], [1], [0], [0], [0, 0, 1, 0], [], []>} : vector<8x8xbf16>, vector<8x8xbf16>, vector<8x8xf32> -> vector<8x8xf32>
    %44 = vector.broadcast %3 : vector<1x8xf32> to vector<8x8xf32>
    %45 = arith.addf %43, %44 : vector<8x8xf32>
    %cst_13 = arith.constant dense<0xFF800000> : vector<8xf32>
    %46 = vector.multi_reduction <maximumf>, %45, %cst_13 [1] : vector<8x8xf32> to vector<8xf32>
    %47 = vector.shape_cast %46 : vector<8xf32> to vector<8x1xf32>
    %48 = vector.broadcast %47 : vector<8x1xf32> to vector<8x8xf32>
    %49 = arith.subf %45, %48 : vector<8x8xf32>
    %50 = math.exp %49 : vector<8x8xf32>
    %cst_14 = arith.constant dense<0.000000e+00> : vector<8xf32>
    %51 = vector.multi_reduction <add>, %50, %cst_14 [1] : vector<8x8xf32> to vector<8xf32>
    %52 = vector.shape_cast %51 : vector<8xf32> to vector<8x1xf32>
    %53 = tpu.reciprocal %52 {approx = true} : vector<8x1xf32> -> vector<8x1xf32>
    %54 = vector.broadcast %53 : vector<8x1xf32> to vector<8x8xf32>
    %55 = arith.mulf %50, %54 : vector<8x8xf32>
    %56 = arith.truncf %55 : vector<8x8xf32> to vector<8x8xbf16>
    %cst_15 = arith.constant dense<0.000000e+00> : vector<8x8xf32>
    %57 = tpu.matmul %56, %42, %cst_15 {dimension_numbers = #tpu.dot_dimension_numbers<[1], [0], [0], [1], [0, 0, 1, 1], [], []>} : vector<8x8xbf16>, vector<8x8xbf16>, vector<8x8xf32> -> vector<8x8xf32>
    %58 = vector.extract_strided_slice %1 {offsets = [0, 72], sizes = [8, 8], strides = [1, 1]} : vector<8x96xbf16> to vector<8x8xbf16>
    %59 = vector.extract_strided_slice %1 {offsets = [0, 80], sizes = [8, 8], strides = [1, 1]} : vector<8x96xbf16> to vector<8x8xbf16>
    %60 = vector.extract_strided_slice %1 {offsets = [0, 88], sizes = [8, 8], strides = [1, 1]} : vector<8x96xbf16> to vector<8x8xbf16>
    %cst_16 = arith.constant dense<0.000000e+00> : vector<8x8xf32>
    %61 = tpu.matmul %58, %59, %cst_16 {dimension_numbers = #tpu.dot_dimension_numbers<[1], [1], [0], [0], [0, 0, 1, 0], [], []>} : vector<8x8xbf16>, vector<8x8xbf16>, vector<8x8xf32> -> vector<8x8xf32>
    %62 = vector.broadcast %3 : vector<1x8xf32> to vector<8x8xf32>
    %63 = arith.addf %61, %62 : vector<8x8xf32>
    %cst_17 = arith.constant dense<0xFF800000> : vector<8xf32>
    %64 = vector.multi_reduction <maximumf>, %63, %cst_17 [1] : vector<8x8xf32> to vector<8xf32>
    %65 = vector.shape_cast %64 : vector<8xf32> to vector<8x1xf32>
    %66 = vector.broadcast %65 : vector<8x1xf32> to vector<8x8xf32>
    %67 = arith.subf %63, %66 : vector<8x8xf32>
    %68 = math.exp %67 : vector<8x8xf32>
    %cst_18 = arith.constant dense<0.000000e+00> : vector<8xf32>
    %69 = vector.multi_reduction <add>, %68, %cst_18 [1] : vector<8x8xf32> to vector<8xf32>
    %70 = vector.shape_cast %69 : vector<8xf32> to vector<8x1xf32>
    %71 = tpu.reciprocal %70 {approx = true} : vector<8x1xf32> -> vector<8x1xf32>
    %72 = vector.broadcast %71 : vector<8x1xf32> to vector<8x8xf32>
    %73 = arith.mulf %68, %72 : vector<8x8xf32>
    %74 = arith.truncf %73 : vector<8x8xf32> to vector<8x8xbf16>
    %cst_19 = arith.constant dense<0.000000e+00> : vector<8x8xf32>
    %75 = tpu.matmul %74, %60, %cst_19 {dimension_numbers = #tpu.dot_dimension_numbers<[1], [0], [0], [1], [0, 0, 1, 1], [], []>} : vector<8x8xbf16>, vector<8x8xbf16>, vector<8x8xf32> -> vector<8x8xf32>
    %76 = tpu.concatenate %21, %39, %57, %75 in 1 : vector<8x8xf32>, vector<8x8xf32>, vector<8x8xf32>, vector<8x8xf32> -> vector<8x32xf32>
    %77 = arith.truncf %76 : vector<8x32xf32> to vector<8x32xbf16>
    %c0_20 = arith.constant 0 : index
    %c0_21 = arith.constant 0 : index
    %c0_22 = arith.constant 0 : index
    %78 = vector.load %arg4[%c0_20, %c0_21, %c0_22] : memref<1x8x32xbf16, #tpu.memory_space<vmem>>, vector<1x8x32xbf16>
    %79 = vector.shape_cast %78 : vector<1x8x32xbf16> to vector<8x32xbf16>
    %80 = vector.shape_cast %77 : vector<8x32xbf16> to vector<1x8x32xbf16>
    tpu.vector_store %arg4[%c0_20, %c0_21, %c0_22], %80 {strides = array<i32>} : memref<1x8x32xbf16, #tpu.memory_space<vmem>>, vector<1x8x32xbf16>,
    return
  }
  func.func @transform_0(%arg0: i32, %arg1: i32) -> (i32, i32, i32) {
    %c0_i32 = arith.constant 0 : i32
    %c0_i32_0 = arith.constant 0 : i32
    return %arg0, %c0_i32, %arg1 : i32, i32, i32
  }
  func.func @transform_1(%arg0: i32, %arg1: i32) -> (i32, i32, i32) {
    %c0_i32 = arith.constant 0 : i32
    %c0_i32_0 = arith.constant 0 : i32
    %c0_i32_1 = arith.constant 0 : i32
    return %arg0, %c0_i32, %c0_i32_0 : i32, i32, i32
  }
  func.func @transform_2(%arg0: i32, %arg1: i32) -> (i32, i32, i32) {
    %c0_i32 = arith.constant 0 : i32
    %c0_i32_0 = arith.constant 0 : i32
    return %arg0, %c0_i32, %arg1 : i32, i32, i32
  }
}

module attributes {stable_mosaic.version = 11 : i64} {
  func.func @_proj_add_ln_kernel(%arg0: i32, %arg1: memref<16x32xbf16, #tpu.memory_space<vmem>>, %arg2: memref<32x32xbf16, #tpu.memory_space<vmem>>, %arg3: memref<1x32xf32, #tpu.memory_space<vmem>>, %arg4: memref<16x32xf32, #tpu.memory_space<vmem>>, %arg5: memref<1x32xf32, #tpu.memory_space<vmem>>, %arg6: memref<1x32xf32, #tpu.memory_space<vmem>>, %arg7: memref<16x32xf32, #tpu.memory_space<vmem>>) attributes {dimension_semantics = [#tpu.dimension_semantics<parallel>], iteration_bounds = array<i64: 1>, scalar_prefetch = 0 : i64, scratch_operands = 0 : i64, tpu.core_type = #tpu.core_type<tc>, window_params = [{transform_indices = @transform_0, window_bounds = array<i64: 16, 32>}, {pipeline_mode = #tpu.pipeline_mode<synchronous>, transform_indices = @transform_1, window_bounds = array<i64: 32, 32>}, {pipeline_mode = #tpu.pipeline_mode<synchronous>, transform_indices = @transform_2, window_bounds = array<i64: 1, 32>}, {transform_indices = @transform_3, window_bounds = array<i64: 16, 32>}, {pipeline_mode = #tpu.pipeline_mode<synchronous>, transform_indices = @transform_4, window_bounds = array<i64: 1, 32>}, {pipeline_mode = #tpu.pipeline_mode<synchronous>, transform_indices = @transform_5, window_bounds = array<i64: 1, 32>}, {transform_indices = @transform_6, window_bounds = array<i64: 16, 32>}]} {
    %c0 = arith.constant 0 : index
    %c0_0 = arith.constant 0 : index
    %0 = vector.load %arg1[%c0, %c0_0] : memref<16x32xbf16, #tpu.memory_space<vmem>>, vector<16x32xbf16>
    %c0_1 = arith.constant 0 : index
    %c0_2 = arith.constant 0 : index
    %1 = vector.load %arg2[%c0_1, %c0_2] : memref<32x32xbf16, #tpu.memory_space<vmem>>, vector<32x32xbf16>
    %cst = arith.constant dense<0.000000e+00> : vector<16x32xf32>
    %2 = tpu.matmul %0, %1, %cst {dimension_numbers = #tpu.dot_dimension_numbers<[1], [0], [0], [1], [0, 0, 1, 1], [], []>} : vector<16x32xbf16>, vector<32x32xbf16>, vector<16x32xf32> -> vector<16x32xf32>
    %c0_3 = arith.constant 0 : index
    %c0_4 = arith.constant 0 : index
    %3 = vector.load %arg3[%c0_3, %c0_4] : memref<1x32xf32, #tpu.memory_space<vmem>>, vector<1x32xf32>
    %4 = vector.broadcast %3 : vector<1x32xf32> to vector<16x32xf32>
    %5 = arith.addf %2, %4 : vector<16x32xf32>
    %c0_5 = arith.constant 0 : index
    %c0_6 = arith.constant 0 : index
    %6 = vector.load %arg4[%c0_5, %c0_6] : memref<16x32xf32, #tpu.memory_space<vmem>>, vector<16x32xf32>
    %7 = arith.addf %5, %6 : vector<16x32xf32>
    %cst_7 = arith.constant dense<0.000000e+00> : vector<16xf32>
    %8 = vector.multi_reduction <add>, %7, %cst_7 [1] : vector<16x32xf32> to vector<16xf32>
    %9 = vector.shape_cast %8 : vector<16xf32> to vector<16x1xf32>
    %cst_8 = arith.constant 3.200000e+01 : f32
    %10 = vector.broadcast %cst_8 : f32 to vector<16x1xf32>
    %11 = arith.divf %9, %10 : vector<16x1xf32>
    %12 = vector.broadcast %11 : vector<16x1xf32> to vector<16x32xf32>
    %13 = arith.subf %7, %12 : vector<16x32xf32>
    %14 = arith.mulf %13, %13 : vector<16x32xf32>
    %cst_9 = arith.constant dense<0.000000e+00> : vector<16xf32>
    %15 = vector.multi_reduction <add>, %14, %cst_9 [1] : vector<16x32xf32> to vector<16xf32>
    %16 = vector.shape_cast %15 : vector<16xf32> to vector<16x1xf32>
    %cst_10 = arith.constant 3.200000e+01 : f32
    %17 = vector.broadcast %cst_10 : f32 to vector<16x1xf32>
    %18 = arith.divf %16, %17 : vector<16x1xf32>
    %19 = vector.broadcast %11 : vector<16x1xf32> to vector<16x32xf32>
    %20 = arith.subf %7, %19 : vector<16x32xf32>
    %cst_11 = arith.constant 9.99999974E-6 : f32
    %21 = vector.broadcast %cst_11 : f32 to vector<16x1xf32>
    %22 = arith.addf %18, %21 : vector<16x1xf32>
    %23 = math.rsqrt %22 : vector<16x1xf32>
    %24 = vector.broadcast %23 : vector<16x1xf32> to vector<16x32xf32>
    %25 = arith.mulf %20, %24 : vector<16x32xf32>
    %c0_12 = arith.constant 0 : index
    %c0_13 = arith.constant 0 : index
    %26 = vector.load %arg5[%c0_12, %c0_13] : memref<1x32xf32, #tpu.memory_space<vmem>>, vector<1x32xf32>
    %27 = vector.broadcast %26 : vector<1x32xf32> to vector<16x32xf32>
    %28 = arith.mulf %25, %27 : vector<16x32xf32>
    %c0_14 = arith.constant 0 : index
    %c0_15 = arith.constant 0 : index
    %29 = vector.load %arg6[%c0_14, %c0_15] : memref<1x32xf32, #tpu.memory_space<vmem>>, vector<1x32xf32>
    %30 = vector.broadcast %29 : vector<1x32xf32> to vector<16x32xf32>
    %31 = arith.addf %28, %30 : vector<16x32xf32>
    %c0_16 = arith.constant 0 : index
    %c0_17 = arith.constant 0 : index
    %32 = vector.load %arg7[%c0_16, %c0_17] : memref<16x32xf32, #tpu.memory_space<vmem>>, vector<16x32xf32>
    tpu.vector_store %arg7[%c0_16, %c0_17], %31 {strides = array<i32>} : memref<16x32xf32, #tpu.memory_space<vmem>>, vector<16x32xf32>,
    return
  }
  func.func @transform_0(%arg0: i32) -> (i32, i32) {
    %c0_i32 = arith.constant 0 : i32
    %c0_i32_0 = arith.constant 0 : i32
    return %arg0, %c0_i32 : i32, i32
  }
  func.func @transform_1(%arg0: i32) -> (i32, i32) {
    %c0_i32 = arith.constant 0 : i32
    %c0_i32_0 = arith.constant 0 : i32
    %c0_i32_1 = arith.constant 0 : i32
    return %c0_i32, %c0_i32_0 : i32, i32
  }
  func.func @transform_2(%arg0: i32) -> (i32, i32) {
    %c0_i32 = arith.constant 0 : i32
    %c0_i32_0 = arith.constant 0 : i32
    %c0_i32_1 = arith.constant 0 : i32
    return %c0_i32, %c0_i32_0 : i32, i32
  }
  func.func @transform_3(%arg0: i32) -> (i32, i32) {
    %c0_i32 = arith.constant 0 : i32
    %c0_i32_0 = arith.constant 0 : i32
    return %arg0, %c0_i32 : i32, i32
  }
  func.func @transform_4(%arg0: i32) -> (i32, i32) {
    %c0_i32 = arith.constant 0 : i32
    %c0_i32_0 = arith.constant 0 : i32
    %c0_i32_1 = arith.constant 0 : i32
    return %c0_i32, %c0_i32_0 : i32, i32
  }
  func.func @transform_5(%arg0: i32) -> (i32, i32) {
    %c0_i32 = arith.constant 0 : i32
    %c0_i32_0 = arith.constant 0 : i32
    %c0_i32_1 = arith.constant 0 : i32
    return %c0_i32, %c0_i32_0 : i32, i32
  }
  func.func @transform_6(%arg0: i32) -> (i32, i32) {
    %c0_i32 = arith.constant 0 : i32
    %c0_i32_0 = arith.constant 0 : i32
    return %arg0, %c0_i32 : i32, i32
  }
}

module attributes {stable_mosaic.version = 11 : i64} {
  func.func @_ffn_add_ln_kernel(%arg0: i32, %arg1: memref<16x32xf32, #tpu.memory_space<vmem>>, %arg2: memref<32x64xbf16, #tpu.memory_space<vmem>>, %arg3: memref<1x64xf32, #tpu.memory_space<vmem>>, %arg4: memref<64x32xbf16, #tpu.memory_space<vmem>>, %arg5: memref<1x32xf32, #tpu.memory_space<vmem>>, %arg6: memref<1x32xf32, #tpu.memory_space<vmem>>, %arg7: memref<1x32xf32, #tpu.memory_space<vmem>>, %arg8: memref<16x32xf32, #tpu.memory_space<vmem>>) attributes {dimension_semantics = [#tpu.dimension_semantics<parallel>], iteration_bounds = array<i64: 1>, scalar_prefetch = 0 : i64, scratch_operands = 0 : i64, tpu.core_type = #tpu.core_type<tc>, window_params = [{transform_indices = @transform_0, window_bounds = array<i64: 16, 32>}, {pipeline_mode = #tpu.pipeline_mode<synchronous>, transform_indices = @transform_1, window_bounds = array<i64: 32, 64>}, {pipeline_mode = #tpu.pipeline_mode<synchronous>, transform_indices = @transform_2, window_bounds = array<i64: 1, 64>}, {pipeline_mode = #tpu.pipeline_mode<synchronous>, transform_indices = @transform_3, window_bounds = array<i64: 64, 32>}, {pipeline_mode = #tpu.pipeline_mode<synchronous>, transform_indices = @transform_4, window_bounds = array<i64: 1, 32>}, {pipeline_mode = #tpu.pipeline_mode<synchronous>, transform_indices = @transform_5, window_bounds = array<i64: 1, 32>}, {pipeline_mode = #tpu.pipeline_mode<synchronous>, transform_indices = @transform_6, window_bounds = array<i64: 1, 32>}, {transform_indices = @transform_7, window_bounds = array<i64: 16, 32>}]} {
    %c0 = arith.constant 0 : index
    %c0_0 = arith.constant 0 : index
    %0 = vector.load %arg1[%c0, %c0_0] : memref<16x32xf32, #tpu.memory_space<vmem>>, vector<16x32xf32>
    %1 = arith.truncf %0 : vector<16x32xf32> to vector<16x32xbf16>
    %c0_1 = arith.constant 0 : index
    %c0_2 = arith.constant 0 : index
    %2 = vector.load %arg2[%c0_1, %c0_2] : memref<32x64xbf16, #tpu.memory_space<vmem>>, vector<32x64xbf16>
    %cst = arith.constant dense<0.000000e+00> : vector<16x64xf32>
    %3 = tpu.matmul %1, %2, %cst {dimension_numbers = #tpu.dot_dimension_numbers<[1], [0], [0], [1], [0, 0, 1, 1], [], []>} : vector<16x32xbf16>, vector<32x64xbf16>, vector<16x64xf32> -> vector<16x64xf32>
    %c0_3 = arith.constant 0 : index
    %c0_4 = arith.constant 0 : index
    %4 = vector.load %arg3[%c0_3, %c0_4] : memref<1x64xf32, #tpu.memory_space<vmem>>, vector<1x64xf32>
    %5 = vector.broadcast %4 : vector<1x64xf32> to vector<16x64xf32>
    %6 = arith.addf %3, %5 : vector<16x64xf32>
    %cst_5 = arith.constant 0.000000e+00 : f32
    %7 = vector.broadcast %cst_5 : f32 to vector<16x64xf32>
    %8 = arith.maximumf %6, %7 : vector<16x64xf32>
    %9 = arith.truncf %8 : vector<16x64xf32> to vector<16x64xbf16>
    %c0_6 = arith.constant 0 : index
    %c0_7 = arith.constant 0 : index
    %10 = vector.load %arg4[%c0_6, %c0_7] : memref<64x32xbf16, #tpu.memory_space<vmem>>, vector<64x32xbf16>
    %cst_8 = arith.constant dense<0.000000e+00> : vector<16x32xf32>
    %11 = tpu.matmul %9, %10, %cst_8 {dimension_numbers = #tpu.dot_dimension_numbers<[1], [0], [0], [1], [0, 0, 1, 1], [], []>} : vector<16x64xbf16>, vector<64x32xbf16>, vector<16x32xf32> -> vector<16x32xf32>
    %c0_9 = arith.constant 0 : index
    %c0_10 = arith.constant 0 : index
    %12 = vector.load %arg5[%c0_9, %c0_10] : memref<1x32xf32, #tpu.memory_space<vmem>>, vector<1x32xf32>
    %13 = vector.broadcast %12 : vector<1x32xf32> to vector<16x32xf32>
    %14 = arith.addf %11, %13 : vector<16x32xf32>
    %15 = arith.addf %14, %0 : vector<16x32xf32>
    %cst_11 = arith.constant dense<0.000000e+00> : vector<16xf32>
    %16 = vector.multi_reduction <add>, %15, %cst_11 [1] : vector<16x32xf32> to vector<16xf32>
    %17 = vector.shape_cast %16 : vector<16xf32> to vector<16x1xf32>
    %cst_12 = arith.constant 3.200000e+01 : f32
    %18 = vector.broadcast %cst_12 : f32 to vector<16x1xf32>
    %19 = arith.divf %17, %18 : vector<16x1xf32>
    %20 = vector.broadcast %19 : vector<16x1xf32> to vector<16x32xf32>
    %21 = arith.subf %15, %20 : vector<16x32xf32>
    %22 = arith.mulf %21, %21 : vector<16x32xf32>
    %cst_13 = arith.constant dense<0.000000e+00> : vector<16xf32>
    %23 = vector.multi_reduction <add>, %22, %cst_13 [1] : vector<16x32xf32> to vector<16xf32>
    %24 = vector.shape_cast %23 : vector<16xf32> to vector<16x1xf32>
    %cst_14 = arith.constant 3.200000e+01 : f32
    %25 = vector.broadcast %cst_14 : f32 to vector<16x1xf32>
    %26 = arith.divf %24, %25 : vector<16x1xf32>
    %27 = vector.broadcast %19 : vector<16x1xf32> to vector<16x32xf32>
    %28 = arith.subf %15, %27 : vector<16x32xf32>
    %cst_15 = arith.constant 9.99999974E-6 : f32
    %29 = vector.broadcast %cst_15 : f32 to vector<16x1xf32>
    %30 = arith.addf %26, %29 : vector<16x1xf32>
    %31 = math.rsqrt %30 : vector<16x1xf32>
    %32 = vector.broadcast %31 : vector<16x1xf32> to vector<16x32xf32>
    %33 = arith.mulf %28, %32 : vector<16x32xf32>
    %c0_16 = arith.constant 0 : index
    %c0_17 = arith.constant 0 : index
    %34 = vector.load %arg6[%c0_16, %c0_17] : memref<1x32xf32, #tpu.memory_space<vmem>>, vector<1x32xf32>
    %35 = vector.broadcast %34 : vector<1x32xf32> to vector<16x32xf32>
    %36 = arith.mulf %33, %35 : vector<16x32xf32>
    %c0_18 = arith.constant 0 : index
    %c0_19 = arith.constant 0 : index
    %37 = vector.load %arg7[%c0_18, %c0_19] : memref<1x32xf32, #tpu.memory_space<vmem>>, vector<1x32xf32>
    %38 = vector.broadcast %37 : vector<1x32xf32> to vector<16x32xf32>
    %39 = arith.addf %36, %38 : vector<16x32xf32>
    %c0_20 = arith.constant 0 : index
    %c0_21 = arith.constant 0 : index
    %40 = vector.load %arg8[%c0_20, %c0_21] : memref<16x32xf32, #tpu.memory_space<vmem>>, vector<16x32xf32>
    tpu.vector_store %arg8[%c0_20, %c0_21], %39 {strides = array<i32>} : memref<16x32xf32, #tpu.memory_space<vmem>>, vector<16x32xf32>,
    return
  }
  func.func @transform_0(%arg0: i32) -> (i32, i32) {
    %c0_i32 = arith.constant 0 : i32
    %c0_i32_0 = arith.constant 0 : i32
    return %arg0, %c0_i32 : i32, i32
  }
  func.func @transform_1(%arg0: i32) -> (i32, i32) {
    %c0_i32 = arith.constant 0 : i32
    %c0_i32_0 = arith.constant 0 : i32
    %c0_i32_1 = arith.constant 0 : i32
    return %c0_i32, %c0_i32_0 : i32, i32
  }
  func.func @transform_2(%arg0: i32) -> (i32, i32) {
    %c0_i32 = arith.constant 0 : i32
    %c0_i32_0 = arith.constant 0 : i32
    %c0_i32_1 = arith.constant 0 : i32
    return %c0_i32, %c0_i32_0 : i32, i32
  }
  func.func @transform_3(%arg0: i32) -> (i32, i32) {
    %c0_i32 = arith.constant 0 : i32
    %c0_i32_0 = arith.constant 0 : i32
    %c0_i32_1 = arith.constant 0 : i32
    return %c0_i32, %c0_i32_0 : i32, i32
  }
  func.func @transform_4(%arg0: i32) -> (i32, i32) {
    %c0_i32 = arith.constant 0 : i32
    %c0_i32_0 = arith.constant 0 : i32
    %c0_i32_1 = arith.constant 0 : i32
    return %c0_i32, %c0_i32_0 : i32, i32
  }
  func.func @transform_5(%arg0: i32) -> (i32, i32) {
    %c0_i32 = arith.constant 0 : i32
    %c0_i32_0 = arith.constant 0 : i32
    %c0_i32_1 = arith.constant 0 : i32
    return %c0_i32, %c0_i32_0 : i32, i32
  }
  func.func @transform_6(%arg0: i32) -> (i32, i32) {
    %c0_i32 = arith.constant 0 : i32
    %c0_i32_0 = arith.constant 0 : i32
    %c0_i32_1 = arith.constant 0 : i32
    return %c0_i32, %c0_i32_0 : i32, i32
  }
  func.func @transform_7(%arg0: i32) -> (i32, i32) {
    %c0_i32 = arith.constant 0 : i32
    %c0_i32_0 = arith.constant 0 : i32
    return %arg0, %c0_i32 : i32, i32
  }
}

module attributes {stable_mosaic.version = 11 : i64} {
  func.func @_lm_head_kernel(%arg0: i32, %arg1: i32, %arg2: memref<16x32xbf16, #tpu.memory_space<vmem>>, %arg3: memref<32x128xbf16, #tpu.memory_space<vmem>>, %arg4: memref<1x128xf32, #tpu.memory_space<vmem>>, %arg5: memref<16x128xf32, #tpu.memory_space<vmem>>) attributes {dimension_semantics = [#tpu.dimension_semantics<parallel>, #tpu.dimension_semantics<parallel>], iteration_bounds = array<i64: 1, 1>, scalar_prefetch = 0 : i64, scratch_operands = 0 : i64, tpu.core_type = #tpu.core_type<tc>, window_params = [{transform_indices = @transform_0, window_bounds = array<i64: 16, 32>}, {transform_indices = @transform_1, window_bounds = array<i64: 32, 128>}, {transform_indices = @transform_2, window_bounds = array<i64: 1, 128>}, {transform_indices = @transform_3, window_bounds = array<i64: 16, 128>}]} {
    %c0 = arith.constant 0 : index
    %c0_0 = arith.constant 0 : index
    %0 = vector.load %arg2[%c0, %c0_0] : memref<16x32xbf16, #tpu.memory_space<vmem>>, vector<16x32xbf16>
    %c0_1 = arith.constant 0 : index
    %c0_2 = arith.constant 0 : index
    %1 = vector.load %arg3[%c0_1, %c0_2] : memref<32x128xbf16, #tpu.memory_space<vmem>>, vector<32x128xbf16>
    %cst = arith.constant dense<0.000000e+00> : vector<16x128xf32>
    %2 = tpu.matmul %0, %1, %cst {dimension_numbers = #tpu.dot_dimension_numbers<[1], [0], [0], [1], [0, 0, 1, 1], [], []>} : vector<16x32xbf16>, vector<32x128xbf16>, vector<16x128xf32> -> vector<16x128xf32>
    %c0_3 = arith.constant 0 : index
    %c0_4 = arith.constant 0 : index
    %3 = vector.load %arg4[%c0_3, %c0_4] : memref<1x128xf32, #tpu.memory_space<vmem>>, vector<1x128xf32>
    %4 = vector.broadcast %3 : vector<1x128xf32> to vector<16x128xf32>
    %5 = arith.addf %2, %4 : vector<16x128xf32>
    %c0_5 = arith.constant 0 : index
    %c0_6 = arith.constant 0 : index
    %6 = vector.load %arg5[%c0_5, %c0_6] : memref<16x128xf32, #tpu.memory_space<vmem>>, vector<16x128xf32>
    tpu.vector_store %arg5[%c0_5, %c0_6], %5 {strides = array<i32>} : memref<16x128xf32, #tpu.memory_space<vmem>>, vector<16x128xf32>,
    return
  }
  func.func @transform_0(%arg0: i32, %arg1: i32) -> (i32, i32) {
    %c0_i32 = arith.constant 0 : i32
    %c0_i32_0 = arith.constant 0 : i32
    return %arg1, %c0_i32 : i32, i32
  }
  func.func @transform_1(%arg0: i32, %arg1: i32) -> (i32, i32) {
    %c0_i32 = arith.constant 0 : i32
    %c0_i32_0 = arith.constant 0 : i32
    return %c0_i32, %arg0 : i32, i32
  }
  func.func @transform_2(%arg0: i32, %arg1: i32) -> (i32, i32) {
    %c0_i32 = arith.constant 0 : i32
    %c0_i32_0 = arith.constant 0 : i32
    return %c0_i32, %arg0 : i32, i32
  }
  func.func @transform_3(%arg0: i32, %arg1: i32) -> (i32, i32) {
    %c0_i32 = arith.constant 0 : i32
    return %arg1, %arg0 : i32, i32
  }
}

</mosaic_0001>

<llo_original>
// kernel: ponart_forward.10
$region0: #{ponart_forward.10}
  #allocation0 [shape = 'u32[]', space=smem, size = 0x4, offset = 0x4, fixed_abs, tag = 'smem constant byte address 0x4 - core index']
  #allocation1 [shape = 'u32[72,128]{1,0:T(1,128)}', space=vmem, size = 0x9000, scoped, tag = 'internal scratch']
  %s0 = inlined_call_operand.vmem [shape: bf16[2,8,96], index: 0, kind: input, shape index: {}]
  %s1 = inlined_call_operand.vmem [shape: f32[2,1,8], index: 1, kind: input, shape index: {}]
  %s2 = inlined_call_operand.vmem [shape: bf16[2,8,32], index: 2, kind: output, shape index: {}]
  %s3 = sld [smem:[#allocation0]]
  $region41: #{ponart_forward.10} parent=0
    _
  %s5 = ssub.s32 1, %s3
  %s6 = scalar_select 0, %s5, %s3
  loop: start=0, step=1, limit=4
  $region2: #{ponart_forward.10} parent=0 // loop_pre_header
    _
  $region3: #{ponart_forward.10} parent=0 // loop_header
    %s8 = sphi 0, %s12
    %p9 = scmp.ge.s32.totalorder %s8, 4
    %s15 = sphi 0, %s27
    %s16 = sphi 0, %s23
    %s17 = sphi 0, %s15
    %s18 = sphi 0, %s16
    %s19 = sphi 0, %s17
    %s20 = sphi 0, %s18
    %s32 = sphi 0, %s34
    %s35 = sphi 0, %s32
    %s36 = sphi 0, %s35
    %s52 = sphi 0, %s36
    %s58 = sphi 0, %s60
    %s61 = sphi 0, %s58
    %s62 = sphi 0, %s61
    %s78 = sphi 0, %s62
    %s86 = sphi 0, %s88
    %s89 = sphi 0, %s86
    %s90 = sphi 0, %s89
    %s106 = sphi 0, %s90
  $region4: #{ponart_forward.10} parent=0 // loop_header_branch
    %11 = sbr.rel (%p9) target = $region8
  $region5: #{ponart_forward.10} parent=0 // loop_body
    %s13 = ssub.s32 %s8, 1
    %s14 = ssub.s32 %s8, 2
    %s21 = sadd.s32 1, %s16
    %p22 = scmp.ge.s32.totalorder %s21, 1
    %s23 = scalar_select %p22, 0, %s21
    %s24 = sadd.s32 1, %s15
    %s25 = scalar_select %p22, %s24, %s15
    %p26 = scmp.ge.s32.totalorder %s25, 2
    %s27 = scalar_select %p26, 0, %s25
    %s28 = ssub.s32 %s15, %s27
    %s29 = ssub.s32 %s16, %s23
    %s30 = sor.u32 %s28, %s29
    %p31 = scmp.eq.s32.totalorder %s30, 0
    %s33 = sadd.s32 %s32, 1
    %s34 = scalar_select %p31, %s32, %s33
    %p37 = pneg %p31
    %p38 = scmp.eq.s32.totalorder %s8, 1
    %p39 = por %p37, %p38
    %p40 = scmp.ne.s32.totalorder %s32, %s35
    %p41 = scmp.eq.s32.totalorder %s8, 0
    %p42 = por %p40, %p41
    %p43 = scmp.ne.s32.totalorder %s32, %s35
    %p44 = scmp.eq.s32.totalorder %s13, 1
    %p45 = por %p43, %p44
    %p46 = scmp.ne.s32.totalorder %s35, %s36
    %p47 = scmp.eq.s32.totalorder %s13, 0
    %p48 = por %p46, %p47
    %p49 = scmp.ne.s32.totalorder %s35, %s36
    %p50 = scmp.eq.s32.totalorder %s14, 1
    %p51 = por %p49, %p50
    %p53 = scmp.ne.s32.totalorder %s36, %s52
    %p54 = scmp.eq.s32.totalorder %s14, 0
    %p55 = por %p53, %p54
    %s56 = ssub.s32 %s15, %s27
    %p57 = scmp.eq.s32.totalorder %s56, 0
    %s59 = sadd.s32 %s58, 1
    %s60 = scalar_select %p57, %s58, %s59
    %p63 = pneg %p57
    %p64 = scmp.eq.s32.totalorder %s8, 1
    %p65 = por %p63, %p64
    %p66 = scmp.ne.s32.totalorder %s58, %s61
    %p67 = scmp.eq.s32.totalorder %s8, 0
    %p68 = por %p66, %p67
    %p69 = scmp.ne.s32.totalorder %s58, %s61
    %p70 = scmp.eq.s32.totalorder %s13, 1
    %p71 = por %p69, %p70
    %p72 = scmp.ne.s32.totalorder %s61, %s62
    %p73 = scmp.eq.s32.totalorder %s13, 0
    %p74 = por %p72, %p73
    %p75 = scmp.ne.s32.totalorder %s61, %s62
    %p76 = scmp.eq.s32.totalorder %s14, 1
    %p77 = por %p75, %p76
    %p79 = scmp.ne.s32.totalorder %s62, %s78
    %p80 = scmp.eq.s32.totalorder %s14, 0
    %p81 = por %p79, %p80
    %s82 = ssub.s32 %s15, %s27
    %s83 = ssub.s32 %s16, %s23
    %s84 = sor.u32 %s82, %s83
    %p85 = scmp.eq.s32.totalorder %s84, 0
    %s87 = sadd.s32 %s86, 1
    %s88 = scalar_select %p85, %s86, %s87
    %p91 = pneg %p85
    %p92 = scmp.eq.s32.totalorder %s8, 1
    %p93 = por %p91, %p92
    %p94 = scmp.ne.s32.totalorder %s86, %s89
    %p95 = scmp.eq.s32.totalorder %s8, 0
    %p96 = por %p94, %p95
    %p97 = scmp.ne.s32.totalorder %s86, %s89
    %p98 = scmp.eq.s32.totalorder %s13, 1
    %p99 = por %p97, %p98
    %p100 = scmp.ne.s32.totalorder %s89, %s90
    %p101 = scmp.eq.s32.totalorder %s13, 0
    %p102 = por %p100, %p101
    %p103 = scmp.ne.s32.totalorder %s89, %s90
    %p104 = scmp.eq.s32.totalorder %s14, 1
    %p105 = por %p103, %p104
    %p107 = scmp.ne.s32.totalorder %s90, %s106
    %p108 = scmp.eq.s32.totalorder %s14, 0
    %p109 = por %p107, %p108
    %p110 = scmp.le.s32.totalorder 1, %s8
    %p111 = scmp.lt.s32.totalorder %s8, 3
    %p112 = pnand %p110, %p111
    %p113 = pneg %p112
    // Predicated region
    $region9: #{ponart_forward.10} parent=5 // pred_check
      _
    $region10: #{ponart_forward.10} parent=5 // pred_check_branch
      %115 = sbr.rel (%p112) target = $region12
    $region11: #{ponart_forward.10} parent=5 // pred_region
      %s116 = ssub.s32 %s8, 1
    $region12: #{ponart_forward.10} parent=5 // pred_fallthru
      _
    %p117 = scmp.lt.s32.totalorder %s8, 2
    // Predicated region
    $region13: #{ponart_forward.10} parent=5 // pred_check
      %p118 = pneg %p117
    $region14: #{ponart_forward.10} parent=5 // pred_check_branch
      %120 = sbr.rel (%p118) target = $region16
    $region15: #{ponart_forward.10} parent=5 // pred_region
      // Predicated region
      $region17: #{ponart_forward.10} parent=15 // pred_check
        %p121 = pneg %p42
      $region18: #{ponart_forward.10} parent=15 // pred_check_branch
        %123 = sbr.rel (%p121) target = $region20
      $region19: #{ponart_forward.10} parent=15 // pred_region
        %p124 = scmp.lt.s32.totalorder %s15, 1
        %s125 = scalar_select %p124, %s15, 1
        %p126 = scmp.lt.s32.totalorder %s16, 0
        %s127 = scalar_select %p126, %s16, 0
        %s128 = sadd.s32 %s127, %s125
        %s129 = smul.addr %s128, 4
        %s130 = scalar_lea.vmem %s0, %s129
      $region20: #{ponart_forward.10} parent=15 // pred_fallthru
        _
      // Predicated region
      $region21: #{ponart_forward.10} parent=15 // pred_check
        %p131 = pneg %p68
      $region22: #{ponart_forward.10} parent=15 // pred_check_branch
        %133 = sbr.rel (%p131) target = $region24
      $region23: #{ponart_forward.10} parent=15 // pred_region
        %p134 = scmp.lt.s32.totalorder %s15, 1
        %s135 = scalar_select %p134, %s15, 1
        %s136 = scalar_lea.vmem %s1, %s135
      $region24: #{ponart_forward.10} parent=15 // pred_fallthru
        _
    $region16: #{ponart_forward.10} parent=5 // pred_fallthru
      _
    %p137 = scmp.le.s32.totalorder 1, %s8
    %p138 = scmp.lt.s32.totalorder %s8, 3
    %p139 = pnand %p137, %p138
    %p140 = pneg %p139
    // Predicated region
    $region25: #{ponart_forward.10} parent=5 // pred_check
      _
    $region26: #{ponart_forward.10} parent=5 // pred_check_branch
      %142 = sbr.rel (%p139) target = $region28
    $region27: #{ponart_forward.10} parent=5 // pred_region
      %s143 = ssub.s32 %s8, 1
      %p144 = scmp.lt.s32.totalorder %s17, 1
      %s145 = scalar_select %p144, %s17, 1
      %p146 = scmp.lt.s32.totalorder %s18, 0
      %s147 = scalar_select %p146, %s18, 0
      %s148 = sadd.s32 %s147, %s145
      %s149 = smul.addr %s148, 4
      %s150 = scalar_lea.vmem %s0, %s149
      %p151 = pneg %p48
      %p152 = pneg %p45
      %p153 = scmp.lt.s32.totalorder %s17, 1
      %s154 = scalar_select %p153, %s17, 1
      %s155 = scalar_lea.vmem %s1, %s154
      %p156 = pneg %p74
      %p157 = pneg %p71
      %p158 = pneg %p102
      %p159 = pneg %p99
      %p160 = scmp.lt.s32.totalorder %s17, 1
      %s161 = scalar_select %p160, %s17, 1
      %p162 = scmp.lt.s32.totalorder %s18, 0
      %s163 = scalar_select %p162, %s18, 0
      %s164 = sadd.s32 %s163, %s161
      %s165 = smul.addr %s164, 4
      %s166 = scalar_lea.vmem %s2, %s165
      %p167 = scmp.lt.s32.totalorder %s17, 1
      %s168 = scalar_select %p167, %s17, 1
      %p169 = scmp.lt.s32.totalorder %s18, 0
      %s170 = scalar_select %p169, %s18, 0
      %s171 = sadd.s32 %s170, %s168
      %s172 = smul.addr %s171, 4
      %s173 = scalar_lea.vmem %s0, %s172
      %p174 = scmp.lt.s32.totalorder %s17, 1
      %s175 = scalar_select %p174, %s17, 1
      %s176 = scalar_lea.vmem %s1, %s175
      %p177 = scmp.lt.s32.totalorder %s17, 1
      %s178 = scalar_select %p177, %s17, 1
      %p179 = scmp.lt.s32.totalorder %s18, 0
      %s180 = scalar_select %p179, %s18, 0
      %s181 = sadd.s32 %s180, %s178
      %s182 = smul.addr %s181, 4
      %s183 = scalar_lea.vmem %s2, %s182
      %v185 = vld [vmem:[%s173] sm:$0xf]
      %v186 = vld [vmem:[%s176] sm:$0x1]
      %v188 = vperm.slane %v186, 0
      %v191 = vunpack.c.l.b16 %v185
      %v192 = vpack.c.b16 %v191, %v191
      %193 = vrot.lane.b32.xlu0 %v192, 120
      %v194 = vpop.permute.xlu0 %193
      %vm195 = vcmask 64512
      %v197 = vsel %vm195, %v185, 0
      %v200 = vsel %vm195, %v194, 0
      %202 = vmatpush.bf16.xpose.msra.mxu0 0
      %203 = vmatpush.bf16.xpose.msra.mxu0 0
      %204 = vmatpush.bf16.xpose.msra.mxu0 0
      %205 = vmatpush.bf16.xpose.msra.mxu0 0
      %206 = vmatpush.bf16.xpose.msra.mxu0 0
      %207 = vmatpush.bf16.xpose.msra.mxu0 0
      %208 = vmatpush.bf16.xpose.msra.mxu0 0
      %209 = vmatpush.bf16.xpose.msra.mxu0 %v200
      %210 = vmatmul.bf16.gmra.mxu0 %v197
      %v211 = vpop.f32.mrf.mxu0
      %v212 = vadd.f32 %v188, %v211
      %v213 = vpop.f32.mrf.mxu0
      %214 = vdwg.mxu0
      %v215 = vsel %vm195, %v212, -inf
      %216 = vmax.xlane.f32.xlu0 %v215
      %v217 = vpop.xlane.xlu0 %216
      %v218 = vsub.f32 %v212, %v217
      %v219 = vmul.f32 %v218, 1.442695
      %v220 = vpow.pop %v219
      %v221 = vsel %vm195, %v220, 0.0
      %222 = vadd.xlane.f32.xlu0 %v221
      %v223 = vpop.xlane.xlu0 %222
      %v224 = vrcp.pop %v223
      %v225 = vmul.f32 %v220, %v224
      %v226 = vpack.c.bf16 %v225, %v225
      %227 = vrot.lane.b32.xlu0 %v192, 112
      %v228 = vpop.permute.xlu0 %227
      %v230 = vsel %vm195, %v226, 0
      %vm232 = vcmask 1043456
      %v234 = vsel %vm232, %v228, 0
      %236 = vmatpush.bf16.msra.mxu0 0
      %237 = vmatpush.bf16.msra.mxu0 0
      %238 = vmatpush.bf16.msra.mxu0 0
      %239 = vmatpush.bf16.msra.mxu0 0
      %240 = vmatpush.bf16.msra.mxu0 0
      %241 = vmatpush.bf16.msra.mxu0 0
      %242 = vmatpush.bf16.msra.mxu0 0
      %243 = vmatpush.bf16.msra.mxu0 %v234
      %244 = vmatmul.bf16.gmra.mxu0 %v230
      %v245 = vpop.f32.mrf.mxu0
      %v246 = vadd.f32 0.0, %v245
      %v247 = vpop.f32.mrf.mxu0
      %248 = vdwg.mxu0
      %249 = vrot.lane.b32.xlu0 %v192, 104
      %v250 = vpop.permute.xlu0 %249
      %251 = vrot.lane.b32.xlu0 %v192, 96
      %v252 = vpop.permute.xlu0 %251
      %v254 = vsel %vm195, %v250, 0
      %v257 = vsel %vm195, %v252, 0
      %259 = vmatpush.bf16.xpose.msra.mxu0 0
      %260 = vmatpush.bf16.xpose.msra.mxu0 0
      %261 = vmatpush.bf16.xpose.msra.mxu0 0
      %262 = vmatpush.bf16.xpose.msra.mxu0 0
      %263 = vmatpush.bf16.xpose.msra.mxu0 0
      %264 = vmatpush.bf16.xpose.msra.mxu0 0
      %265 = vmatpush.bf16.xpose.msra.mxu0 0
      %266 = vmatpush.bf16.xpose.msra.mxu0 %v257
      %267 = vmatmul.bf16.gmra.mxu0 %v254
      %v268 = vpop.f32.mrf.mxu0
      %v269 = vadd.f32 %v188, %v268
      %v270 = vpop.f32.mrf.mxu0
      %271 = vdwg.mxu0
      %v272 = vsel %vm195, %v269, -inf
      %273 = vmax.xlane.f32.xlu0 %v272
      %v274 = vpop.xlane.xlu0 %273
      %v275 = vsub.f32 %v269, %v274
      %v276 = vmul.f32 %v275, 1.442695
      %v277 = vpow.pop %v276
      %v278 = vsel %vm195, %v277, 0.0
      %279 = vadd.xlane.f32.xlu0 %v278
      %v280 = vpop.xlane.xlu0 %279
      %v281 = vrcp.pop %v280
      %v282 = vmul.f32 %v277, %v281
      %v283 = vpack.c.bf16 %v282, %v282
      %284 = vrot.lane.b32.xlu0 %v192, 88
      %v285 = vpop.permute.xlu0 %284
      %v287 = vsel %vm195, %v283, 0
      %v290 = vsel %vm232, %v285, 0
      %292 = vmatpush.bf16.msra.mxu0 0
      %293 = vmatpush.bf16.msra.mxu0 0
      %294 = vmatpush.bf16.msra.mxu0 0
      %295 = vmatpush.bf16.msra.mxu0 0
      %296 = vmatpush.bf16.msra.mxu0 0
      %297 = vmatpush.bf16.msra.mxu0 0
      %298 = vmatpush.bf16.msra.mxu0 0
      %299 = vmatpush.bf16.msra.mxu0 %v290
      %300 = vmatmul.bf16.gmra.mxu0 %v287
      %v301 = vpop.f32.mrf.mxu0
      %v302 = vadd.f32 0.0, %v301
      %v303 = vpop.f32.mrf.mxu0
      %304 = vdwg.mxu0
      %305 = vrot.lane.b32.xlu0 %v192, 80
      %v306 = vpop.permute.xlu0 %305
      %307 = vrot.lane.b32.xlu0 %v192, 72
      %v308 = vpop.permute.xlu0 %307
      %v310 = vsel %vm195, %v306, 0
      %v313 = vsel %vm195, %v308, 0
      %315 = vmatpush.bf16.xpose.msra.mxu0 0
      %316 = vmatpush.bf16.xpose.msra.mxu0 0
      %317 = vmatpush.bf16.xpose.msra.mxu0 0
      %318 = vmatpush.bf16.xpose.msra.mxu0 0
      %319 = vmatpush.bf16.xpose.msra.mxu0 0
      %320 = vmatpush.bf16.xpose.msra.mxu0 0
      %321 = vmatpush.bf16.xpose.msra.mxu0 0
      %322 = vmatpush.bf16.xpose.msra.mxu0 %v313
      %323 = vmatmul.bf16.gmra.mxu0 %v310
      %v324 = vpop.f32.mrf.mxu0
      %v325 = vadd.f32 %v188, %v324
      %v326 = vpop.f32.mrf.mxu0
      %327 = vdwg.mxu0
      %v328 = vsel %vm195, %v325, -inf
      %329 = vmax.xlane.f32.xlu0 %v328
      %v330 = vpop.xlane.xlu0 %329
      %v331 = vsub.f32 %v325, %v330
      %v332 = vmul.f32 %v331, 1.442695
      %v333 = vpow.pop %v332
      %v334 = vsel %vm195, %v333, 0.0
      %335 = vadd.xlane.f32.xlu0 %v334
      %v336 = vpop.xlane.xlu0 %335
      %v337 = vrcp.pop %v336
      %v338 = vmul.f32 %v333, %v337
      %v339 = vpack.c.bf16 %v338, %v338
      %340 = vrot.lane.b32.xlu0 %v192, 64
      %v341 = vpop.permute.xlu0 %340
      %v343 = vsel %vm195, %v339, 0
      %v346 = vsel %vm232, %v341, 0
      %348 = vmatpush.bf16.msra.mxu0 0
      %349 = vmatpush.bf16.msra.mxu0 0
      %350 = vmatpush.bf16.msra.mxu0 0
      %351 = vmatpush.bf16.msra.mxu0 0
      %352 = vmatpush.bf16.msra.mxu0 0
      %353 = vmatpush.bf16.msra.mxu0 0
      %354 = vmatpush.bf16.msra.mxu0 0
      %355 = vmatpush.bf16.msra.mxu0 %v346
      %356 = vmatmul.bf16.gmra.mxu0 %v343
      %v357 = vpop.f32.mrf.mxu0
      %v358 = vadd.f32 0.0, %v357
      %v359 = vpop.f32.mrf.mxu0
      %360 = vdwg.mxu0
      %361 = vrot.lane.b32.xlu0 %v192, 56
      %v362 = vpop.permute.xlu0 %361
      %363 = vrot.lane.b32.xlu0 %v192, 48
      %v364 = vpop.permute.xlu0 %363
      %v366 = vsel %vm195, %v362, 0
      %v369 = vsel %vm195, %v364, 0
      %371 = vmatpush.bf16.xpose.msra.mxu0 0
      %372 = vmatpush.bf16.xpose.msra.mxu0 0
      %373 = vmatpush.bf16.xpose.msra.mxu0 0
      %374 = vmatpush.bf16.xpose.msra.mxu0 0
      %375 = vmatpush.bf16.xpose.msra.mxu0 0
      %376 = vmatpush.bf16.xpose.msra.mxu0 0
      %377 = vmatpush.bf16.xpose.msra.mxu0 0
      %378 = vmatpush.bf16.xpose.msra.mxu0 %v369
      %379 = vmatmul.bf16.gmra.mxu0 %v366
      %v380 = vpop.f32.mrf.mxu0
      %v381 = vadd.f32 %v188, %v380
      %v382 = vpop.f32.mrf.mxu0
      %383 = vdwg.mxu0
      %v384 = vsel %vm195, %v381, -inf
      %385 = vmax.xlane.f32.xlu0 %v384
      %v386 = vpop.xlane.xlu0 %385
      %v387 = vsub.f32 %v381, %v386
      %v388 = vmul.f32 %v387, 1.442695
      %v389 = vpow.pop %v388
      %v390 = vsel %vm195, %v389, 0.0
      %391 = vadd.xlane.f32.xlu0 %v390
      %v392 = vpop.xlane.xlu0 %391
      %v393 = vrcp.pop %v392
      %v394 = vmul.f32 %v389, %v393
      %v395 = vpack.c.bf16 %v394, %v394
      %396 = vrot.lane.b32.xlu0 %v192, 40
      %v397 = vpop.permute.xlu0 %396
      %v399 = vsel %vm195, %v395, 0
      %v402 = vsel %vm232, %v397, 0
      %404 = vmatpush.bf16.msra.mxu0 0
      %405 = vmatpush.bf16.msra.mxu0 0
      %406 = vmatpush.bf16.msra.mxu0 0
      %407 = vmatpush.bf16.msra.mxu0 0
      %408 = vmatpush.bf16.msra.mxu0 0
      %409 = vmatpush.bf16.msra.mxu0 0
      %410 = vmatpush.bf16.msra.mxu0 0
      %411 = vmatpush.bf16.msra.mxu0 %v402
      %412 = vmatmul.bf16.gmra.mxu0 %v399
      %v413 = vpop.f32.mrf.mxu0
      %v414 = vadd.f32 0.0, %v413
      %v415 = vpop.f32.mrf.mxu0
      %416 = vdwg.mxu0
      %418 = vrot.lane.b32.xlu0 %v302, 8
      %v419 = vpop.permute.xlu0 %418
      %422 = vrot.lane.b32.xlu0 %v358, 16
      %v423 = vpop.permute.xlu0 %422
      %426 = vrot.lane.b32.xlu0 %v414, 24
      %v427 = vpop.permute.xlu0 %426
      %v429 = vsel %vm195, %v246, %v419
      %vm430 = vcmask 130048
      %v431 = vsel %vm430, %v429, %v423
      %vm432 = vcmask 195584
      %v433 = vsel %vm432, %v431, %v427
      %v434 = vpack.c.bf16 %v433, %v433
      %vm435 = vcmask 257024
      %436 = vst.msk [vmem:[%s183] sm:$0xf] %vm435, %v434
      %p437 = scmp.lt.s32.totalorder %s17, 1
      %s438 = scalar_select %p437, %s17, 1
      %p439 = scmp.lt.s32.totalorder %s18, 0
      %s440 = scalar_select %p439, %s18, 0
      %s441 = sadd.s32 %s440, %s438
      %s442 = smul.addr %s441, 4
      %s443 = scalar_lea.vmem %s2, %s442
      // Predicated region
      $region29: #{ponart_forward.10} parent=27 // pred_check
        %p444 = pneg %p99
      $region30: #{ponart_forward.10} parent=27 // pred_check_branch
        %446 = sbr.rel (%p444) target = $region32
      $region31: #{ponart_forward.10} parent=27 // pred_region
        _
      $region32: #{ponart_forward.10} parent=27 // pred_fallthru
        _
    $region28: #{ponart_forward.10} parent=5 // pred_fallthru
      _
    %p447 = scmp.le.s32.totalorder 2, %s8
    // Predicated region
    $region33: #{ponart_forward.10} parent=5 // pred_check
      %p448 = pneg %p447
    $region34: #{ponart_forward.10} parent=5 // pred_check_branch
      %450 = sbr.rel (%p448) target = $region36
    $region35: #{ponart_forward.10} parent=5 // pred_region
      %s451 = ssub.s32 %s8, 2
      // Predicated region
      $region37: #{ponart_forward.10} parent=35 // pred_check
        %p452 = pneg %p105
      $region38: #{ponart_forward.10} parent=35 // pred_check_branch
        %454 = sbr.rel (%p452) target = $region40
      $region39: #{ponart_forward.10} parent=35 // pred_region
        %p455 = scmp.lt.s32.totalorder %s19, 1
        %s456 = scalar_select %p455, %s19, 1
        %p457 = scmp.lt.s32.totalorder %s20, 0
        %s458 = scalar_select %p457, %s20, 0
        %s459 = sadd.s32 %s458, %s456
        %s460 = smul.addr %s459, 4
        %s461 = scalar_lea.vmem %s2, %s460
      $region40: #{ponart_forward.10} parent=35 // pred_fallthru
        _
    $region36: #{ponart_forward.10} parent=5 // pred_fallthru
      _
  $region6: #{ponart_forward.10} parent=0 // loop_footer
    %s12 = sadd.s32 1, %s8
  $region7: #{ponart_forward.10} parent=0 // loop_footer_branch
    %7 = sbr.rel target = $region3
  $region8: #{ponart_forward.10} parent=0 // loop_exit
    _

// kernel: ponart_forward.9
$region0: #{ponart_forward.9}
  #allocation0 [shape = 'u32[]', space=smem, size = 0x4, offset = 0x4, fixed_abs, tag = 'smem constant byte address 0x4 - core index']
  #allocation1 [shape = 'u32[72,128]{1,0:T(1,128)}', space=vmem, size = 0x9000, scoped, tag = 'internal scratch']
  %s0 = inlined_call_operand.vmem [shape: f32[16,32], index: 0, kind: input, shape index: {}]
  %s1 = inlined_call_operand.vmem [shape: bf16[32,96], index: 1, kind: input, shape index: {}]
  %s2 = inlined_call_operand.vmem [shape: f32[1,96], index: 2, kind: input, shape index: {}]
  %s3 = inlined_call_operand.vmem [shape: bf16[16,96], index: 3, kind: output, shape index: {}]
  %s4 = sld [smem:[#allocation0]]
  $region22: #{ponart_forward.9} parent=0
    _
  %s6 = ssub.s32 1, %s4
  %s7 = scalar_select 0, %s6, %s4
  // Predicated region
  $region2: #{ponart_forward.9} parent=0 // pred_check
    _
  $region3: #{ponart_forward.9} parent=0 // pred_check_branch
    %9 = sbr.rel (0) target = $region5
  $region4: #{ponart_forward.9} parent=0 // pred_region
    _
  $region5: #{ponart_forward.9} parent=0 // pred_fallthru
    _
  // Predicated region
  $region6: #{ponart_forward.9} parent=0 // pred_check
    _
  $region7: #{ponart_forward.9} parent=0 // pred_check_branch
    %11 = sbr.rel (0) target = $region9
  $region8: #{ponart_forward.9} parent=0 // pred_region
    _
  $region9: #{ponart_forward.9} parent=0 // pred_fallthru
    _
  // Predicated region
  $region10: #{ponart_forward.9} parent=0 // pred_check
    _
  $region11: #{ponart_forward.9} parent=0 // pred_check_branch
    %13 = sbr.rel (0) target = $region13
  $region12: #{ponart_forward.9} parent=0 // pred_region
    _
  $region13: #{ponart_forward.9} parent=0 // pred_fallthru
    _
  %v15 = vld [vmem:[%s0] sm:$0xff]
  %v16 = vld [vmem:[%s0 + $0x8] sm:$0xff]
  %v17 = vpack.c.bf16 %v16, %v15
  %v18 = vld [vmem:[%s1] sm:$0xf]
  %v19 = vld [vmem:[%s1 + $0x4] sm:$0xf]
  %v20 = vld [vmem:[%s1 + $0x8] sm:$0xf]
  %v21 = vld [vmem:[%s1 + $0xc] sm:$0xf]
  %v22 = vld [vmem:[%s2] sm:$0x1]
  %v24 = vperm.slane %v22, 0
  %v30 = vunpack.c.l.b16 %v18
  %v31 = vunpack.c.l.b16 %v19
  %v32 = vunpack.c.l.b16 %v20
  %v33 = vunpack.c.l.b16 %v21
  %v34 = vpack.c.b16 %v31, %v30
  %v35 = vpack.c.b16 %v33, %v32
  %vm38 = vcmask 261120
  %v40 = vsel %vm38, %v17, 0
  %42 = vmatpush.bf16.msra.mxu0 0
  %43 = vmatpush.bf16.msra.mxu0 0
  %44 = vmatpush.bf16.msra.mxu0 0
  %45 = vmatpush.bf16.msra.mxu0 0
  %46 = vmatpush.bf16.msra.mxu0 0
  %47 = vmatpush.bf16.msra.mxu0 0
  %48 = vmatpush.bf16.msra.mxu0 %v35
  %49 = vmatpush.bf16.msra.mxu0 %v34
  %50 = vmatmul.bf16.gmra.mxu0 %v40
  %v51 = vpop.f32.mrf.mxu0
  %v52 = vadd.f32 %v24, %v51
  %v53 = vpop.f32.mrf.mxu0
  %v54 = vadd.f32 %v24, %v53
  %55 = vdwg.mxu0
  %v56 = vpack.c.bf16 %v52, %v52
  %v57 = vpack.c.bf16 %v54, %v54
  %vm58 = vcmask 781312
  %59 = vst.msk [vmem:[%s3] sm:$0xf] %vm58, %v56
  %60 = vst.msk [vmem:[%s3 + $0x4] sm:$0xf] %vm58, %v57
  // Predicated region
  $region14: #{ponart_forward.9} parent=0 // pred_check
    _
  $region15: #{ponart_forward.9} parent=0 // pred_check_branch
    %62 = sbr.rel (0) target = $region17
  $region16: #{ponart_forward.9} parent=0 // pred_region
    _
  $region17: #{ponart_forward.9} parent=0 // pred_fallthru
    _
  // Predicated region
  $region18: #{ponart_forward.9} parent=0 // pred_check
    _
  $region19: #{ponart_forward.9} parent=0 // pred_check_branch
    %64 = sbr.rel (0) target = $region21
  $region20: #{ponart_forward.9} parent=0 // pred_region
    _
  $region21: #{ponart_forward.9} parent=0 // pred_fallthru
    _

// kernel: ponart_forward.11
$region0: #{ponart_forward.11}
  #allocation0 [shape = 'u32[]', space=smem, size = 0x4, offset = 0x4, fixed_abs, tag = 'smem constant byte address 0x4 - core index']
  #allocation1 [shape = 'u32[72,128]{1,0:T(1,128)}', space=vmem, size = 0x9000, scoped, tag = 'internal scratch']
  %s0 = inlined_call_operand.vmem [shape: bf16[16,32], index: 0, kind: input, shape index: {}]
  %s1 = inlined_call_operand.vmem [shape: bf16[32,32], index: 1, kind: input, shape index: {}]
  %s2 = inlined_call_operand.vmem [shape: f32[1,32], index: 2, kind: input, shape index: {}]
  %s3 = inlined_call_operand.vmem [shape: f32[16,32], index: 3, kind: input, shape index: {}]
  %s4 = inlined_call_operand.vmem [shape: f32[1,32], index: 4, kind: input, shape index: {}]
  %s5 = inlined_call_operand.vmem [shape: f32[1,32], index: 5, kind: input, shape index: {}]
  %s6 = inlined_call_operand.vmem [shape: f32[16,32], index: 6, kind: output, shape index: {}]
  %s7 = sld [smem:[#allocation0]]
  $region34: #{ponart_forward.11} parent=0
    _
  %s9 = ssub.s32 1, %s7
  %s10 = scalar_select 0, %s9, %s7
  // Predicated region
  $region2: #{ponart_forward.11} parent=0 // pred_check
    _
  $region3: #{ponart_forward.11} parent=0 // pred_check_branch
    %12 = sbr.rel (0) target = $region5
  $region4: #{ponart_forward.11} parent=0 // pred_region
    _
  $region5: #{ponart_forward.11} parent=0 // pred_fallthru
    _
  // Predicated region
  $region6: #{ponart_forward.11} parent=0 // pred_check
    _
  $region7: #{ponart_forward.11} parent=0 // pred_check_branch
    %14 = sbr.rel (0) target = $region9
  $region8: #{ponart_forward.11} parent=0 // pred_region
    _
  $region9: #{ponart_forward.11} parent=0 // pred_fallthru
    _
  // Predicated region
  $region10: #{ponart_forward.11} parent=0 // pred_check
    _
  $region11: #{ponart_forward.11} parent=0 // pred_check_branch
    %16 = sbr.rel (0) target = $region13
  $region12: #{ponart_forward.11} parent=0 // pred_region
    _
  $region13: #{ponart_forward.11} parent=0 // pred_fallthru
    _
  // Predicated region
  $region14: #{ponart_forward.11} parent=0 // pred_check
    _
  $region15: #{ponart_forward.11} parent=0 // pred_check_branch
    %18 = sbr.rel (0) target = $region17
  $region16: #{ponart_forward.11} parent=0 // pred_region
    _
  $region17: #{ponart_forward.11} parent=0 // pred_fallthru
    _
  // Predicated region
  $region18: #{ponart_forward.11} parent=0 // pred_check
    _
  $region19: #{ponart_forward.11} parent=0 // pred_check_branch
    %20 = sbr.rel (0) target = $region21
  $region20: #{ponart_forward.11} parent=0 // pred_region
    _
  $region21: #{ponart_forward.11} parent=0 // pred_fallthru
    _
  // Predicated region
  $region22: #{ponart_forward.11} parent=0 // pred_check
    _
  $region23: #{ponart_forward.11} parent=0 // pred_check_branch
    %22 = sbr.rel (0) target = $region25
  $region24: #{ponart_forward.11} parent=0 // pred_region
    _
  $region25: #{ponart_forward.11} parent=0 // pred_fallthru
    _
  %v24 = vld [vmem:[%s0] sm:$0xf]
  %v25 = vld [vmem:[%s0 + $0x4] sm:$0xf]
  %v26 = vld [vmem:[%s1] sm:$0xf]
  %v27 = vld [vmem:[%s1 + $0x4] sm:$0xf]
  %v28 = vld [vmem:[%s1 + $0x8] sm:$0xf]
  %v29 = vld [vmem:[%s1 + $0xc] sm:$0xf]
  %v30 = vld [vmem:[%s2] sm:$0x1]
  %v32 = vperm.slane %v30, 0
  %v36 = vunpack.c.l.b16 %v24
  %v37 = vunpack.c.l.b16 %v25
  %v38 = vpack.c.b16 %v37, %v36
  %v43 = vunpack.c.l.b16 %v26
  %v44 = vunpack.c.l.b16 %v27
  %v45 = vunpack.c.l.b16 %v28
  %v46 = vunpack.c.l.b16 %v29
  %v47 = vpack.c.b16 %v44, %v43
  %v48 = vpack.c.b16 %v46, %v45
  %vm51 = vcmask 261120
  %v53 = vsel %vm51, %v38, 0
  %55 = vmatpush.bf16.msra.mxu0 0
  %56 = vmatpush.bf16.msra.mxu0 0
  %57 = vmatpush.bf16.msra.mxu0 0
  %58 = vmatpush.bf16.msra.mxu0 0
  %59 = vmatpush.bf16.msra.mxu0 0
  %60 = vmatpush.bf16.msra.mxu0 0
  %61 = vmatpush.bf16.msra.mxu0 %v48
  %62 = vmatpush.bf16.msra.mxu0 %v47
  %63 = vmatmul.bf16.gmra.mxu0 %v53
  %v64 = vpop.f32.mrf.mxu0
  %v65 = vadd.f32 %v32, %v64
  %v66 = vpop.f32.mrf.mxu0
  %v67 = vadd.f32 %v32, %v66
  %68 = vdwg.mxu0
  %v69 = vld [vmem:[%s3] sm:$0xff]
  %v70 = vld [vmem:[%s3 + $0x8] sm:$0xff]
  %v71 = vadd.f32 %v65, %v69
  %v72 = vadd.f32 %v67, %v70
  %v73 = vsel %vm51, %v71, 0.0
  %74 = vadd.xlane.f32.xlu0 %v73
  %v75 = vpop.xlane.xlu0 %74
  %v76 = vsel %vm51, %v72, 0.0
  %77 = vadd.xlane.f32.xlu0 %v76
  %v78 = vpop.xlane.xlu0 %77
  %v79 = vrcp.pop 32.0
  %v80 = vmul.f32 32.0, %v79
  %v81 = vsub.f32 1.0, %v80
  %v82 = vmul.f32 %v79, %v81
  %v83 = vadd.f32 %v79, %v82
  %vm84 = vweird.f32 %v79
  %v85 = vsel %vm84, %v79, %v83
  %v86 = vmul.f32 %v75, %v85
  %v87 = vmul.f32 %v78, %v85
  %v88 = vsub.f32 %v71, %v86
  %v89 = vsub.f32 %v72, %v87
  %v90 = vmul.f32 %v88, %v88
  %v91 = vmul.f32 %v89, %v89
  %v92 = vsel %vm51, %v90, 0.0
  %93 = vadd.xlane.f32.xlu0 %v92
  %v94 = vpop.xlane.xlu0 %93
  %v95 = vsel %vm51, %v91, 0.0
  %96 = vadd.xlane.f32.xlu0 %v95
  %v97 = vpop.xlane.xlu0 %96
  %v98 = vmul.f32 %v94, %v85
  %v99 = vmul.f32 %v97, %v85
  %v100 = vadd.f32 %v98, 1e-05
  %v101 = vadd.f32 %v99, 1e-05
  %v102 = vrsqrt.pop %v100
  %v103 = vmul.f32 %v102, %v100
  %v104 = vmul.f32 %v103, %v102
  %v105 = vmul.f32 0.5, %v104
  %v106 = vsub.f32 1.5, %v105
  %v107 = vmul.f32 %v102, %v106
  %vm108 = vweird.f32 %v100
  %vm109 = vweird.f32 %v102
  %vm110 = vmor %vm108, %vm109
  %v111 = vsel %vm110, %v102, %v107
  %v112 = vrsqrt.pop %v101
  %v113 = vmul.f32 %v112, %v101
  %v114 = vmul.f32 %v113, %v112
  %v115 = vmul.f32 0.5, %v114
  %v116 = vsub.f32 1.5, %v115
  %v117 = vmul.f32 %v112, %v116
  %vm118 = vweird.f32 %v101
  %vm119 = vweird.f32 %v112
  %vm120 = vmor %vm118, %vm119
  %v121 = vsel %vm120, %v112, %v117
  %v122 = vmul.f32 %v88, %v111
  %v123 = vmul.f32 %v89, %v121
  %v124 = vld [vmem:[%s4] sm:$0x1]
  %v126 = vperm.slane %v124, 0
  %v128 = vmul.f32 %v122, %v126
  %v129 = vmul.f32 %v123, %v126
  %v130 = vld [vmem:[%s5] sm:$0x1]
  %v132 = vperm.slane %v130, 0
  %v134 = vadd.f32 %v128, %v132
  %v135 = vadd.f32 %v129, %v132
  %136 = vst.msk [vmem:[%s6] sm:$0xff] %vm51, %v134
  %137 = vst.msk [vmem:[%s6 + $0x8] sm:$0xff] %vm51, %v135
  // Predicated region
  $region26: #{ponart_forward.11} parent=0 // pred_check
    _
  $region27: #{ponart_forward.11} parent=0 // pred_check_branch
    %139 = sbr.rel (0) target = $region29
  $region28: #{ponart_forward.11} parent=0 // pred_region
    _
  $region29: #{ponart_forward.11} parent=0 // pred_fallthru
    _
  // Predicated region
  $region30: #{ponart_forward.11} parent=0 // pred_check
    _
  $region31: #{ponart_forward.11} parent=0 // pred_check_branch
    %141 = sbr.rel (0) target = $region33
  $region32: #{ponart_forward.11} parent=0 // pred_region
    _
  $region33: #{ponart_forward.11} parent=0 // pred_fallthru
    _

// kernel: ponart_forward.12
$region0: #{ponart_forward.12}
  #allocation0 [shape = 'u32[]', space=smem, size = 0x4, offset = 0x4, fixed_abs, tag = 'smem constant byte address 0x4 - core index']
  #allocation1 [shape = 'u32[72,128]{1,0:T(1,128)}', space=vmem, size = 0x9000, scoped, tag = 'internal scratch']
  %s0 = inlined_call_operand.vmem [shape: f32[16,32], index: 0, kind: input, shape index: {}]
  %s1 = inlined_call_operand.vmem [shape: bf16[32,64], index: 1, kind: input, shape index: {}]
  %s2 = inlined_call_operand.vmem [shape: f32[1,64], index: 2, kind: input, shape index: {}]
  %s3 = inlined_call_operand.vmem [shape: bf16[64,32], index: 3, kind: input, shape index: {}]
  %s4 = inlined_call_operand.vmem [shape: f32[1,32], index: 4, kind: input, shape index: {}]
  %s5 = inlined_call_operand.vmem [shape: f32[1,32], index: 5, kind: input, shape index: {}]
  %s6 = inlined_call_operand.vmem [shape: f32[1,32], index: 6, kind: input, shape index: {}]
  %s7 = inlined_call_operand.vmem [shape: f32[16,32], index: 7, kind: output, shape index: {}]
  %s8 = sld [smem:[#allocation0]]
  $region38: #{ponart_forward.12} parent=0
    _
  %s10 = ssub.s32 1, %s8
  %s11 = scalar_select 0, %s10, %s8
  // Predicated region
  $region2: #{ponart_forward.12} parent=0 // pred_check
    _
  $region3: #{ponart_forward.12} parent=0 // pred_check_branch
    %13 = sbr.rel (0) target = $region5
  $region4: #{ponart_forward.12} parent=0 // pred_region
    _
  $region5: #{ponart_forward.12} parent=0 // pred_fallthru
    _
  // Predicated region
  $region6: #{ponart_forward.12} parent=0 // pred_check
    _
  $region7: #{ponart_forward.12} parent=0 // pred_check_branch
    %15 = sbr.rel (0) target = $region9
  $region8: #{ponart_forward.12} parent=0 // pred_region
    _
  $region9: #{ponart_forward.12} parent=0 // pred_fallthru
    _
  // Predicated region
  $region10: #{ponart_forward.12} parent=0 // pred_check
    _
  $region11: #{ponart_forward.12} parent=0 // pred_check_branch
    %17 = sbr.rel (0) target = $region13
  $region12: #{ponart_forward.12} parent=0 // pred_region
    _
  $region13: #{ponart_forward.12} parent=0 // pred_fallthru
    _
  // Predicated region
  $region14: #{ponart_forward.12} parent=0 // pred_check
    _
  $region15: #{ponart_forward.12} parent=0 // pred_check_branch
    %19 = sbr.rel (0) target = $region17
  $region16: #{ponart_forward.12} parent=0 // pred_region
    _
  $region17: #{ponart_forward.12} parent=0 // pred_fallthru
    _
  // Predicated region
  $region18: #{ponart_forward.12} parent=0 // pred_check
    _
  $region19: #{ponart_forward.12} parent=0 // pred_check_branch
    %21 = sbr.rel (0) target = $region21
  $region20: #{ponart_forward.12} parent=0 // pred_region
    _
  $region21: #{ponart_forward.12} parent=0 // pred_fallthru
    _
  // Predicated region
  $region22: #{ponart_forward.12} parent=0 // pred_check
    _
  $region23: #{ponart_forward.12} parent=0 // pred_check_branch
    %23 = sbr.rel (0) target = $region25
  $region24: #{ponart_forward.12} parent=0 // pred_region
    _
  $region25: #{ponart_forward.12} parent=0 // pred_fallthru
    _
  // Predicated region
  $region26: #{ponart_forward.12} parent=0 // pred_check
    _
  $region27: #{ponart_forward.12} parent=0 // pred_check_branch
    %25 = sbr.rel (0) target = $region29
  $region28: #{ponart_forward.12} parent=0 // pred_region
    _
  $region29: #{ponart_forward.12} parent=0 // pred_fallthru
    _
  %v27 = vld [vmem:[%s0] sm:$0xff]
  %v28 = vld [vmem:[%s0 + $0x8] sm:$0xff]
  %v29 = vpack.c.bf16 %v28, %v27
  %v30 = vld [vmem:[%s1] sm:$0xf]
  %v31 = vld [vmem:[%s1 + $0x4] sm:$0xf]
  %v32 = vld [vmem:[%s1 + $0x8] sm:$0xf]
  %v33 = vld [vmem:[%s1 + $0xc] sm:$0xf]
  %v34 = vld [vmem:[%s2] sm:$0x1]
  %v36 = vperm.slane %v34, 0
  %v42 = vunpack.c.l.b16 %v30
  %v43 = vunpack.c.l.b16 %v31
  %v44 = vunpack.c.l.b16 %v32
  %v45 = vunpack.c.l.b16 %v33
  %v46 = vpack.c.b16 %v43, %v42
  %v47 = vpack.c.b16 %v45, %v44
  %vm50 = vcmask 261120
  %v52 = vsel %vm50, %v29, 0
  %54 = vmatpush.bf16.msra.mxu0 0
  %55 = vmatpush.bf16.msra.mxu0 0
  %56 = vmatpush.bf16.msra.mxu0 0
  %57 = vmatpush.bf16.msra.mxu0 0
  %58 = vmatpush.bf16.msra.mxu0 0
  %59 = vmatpush.bf16.msra.mxu0 0
  %60 = vmatpush.bf16.msra.mxu0 %v47
  %61 = vmatpush.bf16.msra.mxu0 %v46
  %62 = vmatmul.bf16.gmra.mxu0 %v52
  %v63 = vpop.f32.mrf.mxu0
  %v64 = vadd.f32 %v36, %v63
  %v65 = vpop.f32.mrf.mxu0
  %v66 = vadd.f32 %v36, %v65
  %67 = vdwg.mxu0
  %v68 = vmax.f32 %v64, 0.0
  %v69 = vmax.f32 %v66, 0.0
  %v70 = vpack.c.bf16 %v69, %v68
  %v71 = vld [vmem:[%s3] sm:$0xf]
  %v72 = vld [vmem:[%s3 + $0x4] sm:$0xf]
  %v73 = vld [vmem:[%s3 + $0x8] sm:$0xf]
  %v74 = vld [vmem:[%s3 + $0xc] sm:$0xf]
  %v75 = vld [vmem:[%s3 + $0x10] sm:$0xf]
  %v76 = vld [vmem:[%s3 + $0x14] sm:$0xf]
  %v77 = vld [vmem:[%s3 + $0x18] sm:$0xf]
  %v78 = vld [vmem:[%s3 + $0x1c] sm:$0xf]
  %v79 = vld [vmem:[%s4] sm:$0x1]
  %v81 = vperm.slane %v79, 0
  %v91 = vunpack.c.l.b16 %v71
  %v92 = vunpack.c.l.b16 %v72
  %v93 = vunpack.c.l.b16 %v73
  %v94 = vunpack.c.l.b16 %v74
  %v95 = vunpack.c.l.b16 %v75
  %v96 = vunpack.c.l.b16 %v76
  %v97 = vunpack.c.l.b16 %v77
  %v98 = vunpack.c.l.b16 %v78
  %v99 = vpack.c.b16 %v92, %v91
  %v100 = vpack.c.b16 %v94, %v93
  %v101 = vpack.c.b16 %v96, %v95
  %v102 = vpack.c.b16 %v98, %v97
  %vm107 = vcmask 523264
  %v109 = vsel %vm107, %v70, 0
  %111 = vmatpush.bf16.msra.mxu0 0
  %112 = vmatpush.bf16.msra.mxu0 0
  %113 = vmatpush.bf16.msra.mxu0 0
  %114 = vmatpush.bf16.msra.mxu0 0
  %115 = vmatpush.bf16.msra.mxu0 %v102
  %116 = vmatpush.bf16.msra.mxu0 %v101
  %117 = vmatpush.bf16.msra.mxu0 %v100
  %118 = vmatpush.bf16.msra.mxu0 %v99
  %119 = vmatmul.bf16.gmra.mxu0 %v109
  %v120 = vpop.f32.mrf.mxu0
  %v121 = vadd.f32 %v81, %v120
  %v122 = vpop.f32.mrf.mxu0
  %v123 = vadd.f32 %v81, %v122
  %124 = vdwg.mxu0
  %v125 = vadd.f32 %v121, %v27
  %v126 = vadd.f32 %v123, %v28
  %v127 = vsel %vm50, %v125, 0.0
  %128 = vadd.xlane.f32.xlu0 %v127
  %v129 = vpop.xlane.xlu0 %128
  %v130 = vsel %vm50, %v126, 0.0
  %131 = vadd.xlane.f32.xlu0 %v130
  %v132 = vpop.xlane.xlu0 %131
  %v133 = vrcp.pop 32.0
  %v134 = vmul.f32 32.0, %v133
  %v135 = vsub.f32 1.0, %v134
  %v136 = vmul.f32 %v133, %v135
  %v137 = vadd.f32 %v133, %v136
  %vm138 = vweird.f32 %v133
  %v139 = vsel %vm138, %v133, %v137
  %v140 = vmul.f32 %v129, %v139
  %v141 = vmul.f32 %v132, %v139
  %v142 = vsub.f32 %v125, %v140
  %v143 = vsub.f32 %v126, %v141
  %v144 = vmul.f32 %v142, %v142
  %v145 = vmul.f32 %v143, %v143
  %v146 = vsel %vm50, %v144, 0.0
  %147 = vadd.xlane.f32.xlu0 %v146
  %v148 = vpop.xlane.xlu0 %147
  %v149 = vsel %vm50, %v145, 0.0
  %150 = vadd.xlane.f32.xlu0 %v149
  %v151 = vpop.xlane.xlu0 %150
  %v152 = vmul.f32 %v148, %v139
  %v153 = vmul.f32 %v151, %v139
  %v154 = vadd.f32 %v152, 1e-05
  %v155 = vadd.f32 %v153, 1e-05
  %v156 = vrsqrt.pop %v154
  %v157 = vmul.f32 %v156, %v154
  %v158 = vmul.f32 %v157, %v156
  %v159 = vmul.f32 0.5, %v158
  %v160 = vsub.f32 1.5, %v159
  %v161 = vmul.f32 %v156, %v160
  %vm162 = vweird.f32 %v154
  %vm163 = vweird.f32 %v156
  %vm164 = vmor %vm162, %vm163
  %v165 = vsel %vm164, %v156, %v161
  %v166 = vrsqrt.pop %v155
  %v167 = vmul.f32 %v166, %v155
  %v168 = vmul.f32 %v167, %v166
  %v169 = vmul.f32 0.5, %v168
  %v170 = vsub.f32 1.5, %v169
  %v171 = vmul.f32 %v166, %v170
  %vm172 = vweird.f32 %v155
  %vm173 = vweird.f32 %v166
  %vm174 = vmor %vm172, %vm173
  %v175 = vsel %vm174, %v166, %v171
  %v176 = vmul.f32 %v142, %v165
  %v177 = vmul.f32 %v143, %v175
  %v178 = vld [vmem:[%s5] sm:$0x1]
  %v180 = vperm.slane %v178, 0
  %v182 = vmul.f32 %v176, %v180
  %v183 = vmul.f32 %v177, %v180
  %v184 = vld [vmem:[%s6] sm:$0x1]
  %v186 = vperm.slane %v184, 0
  %v188 = vadd.f32 %v182, %v186
  %v189 = vadd.f32 %v183, %v186
  %190 = vst.msk [vmem:[%s7] sm:$0xff] %vm50, %v188
  %191 = vst.msk [vmem:[%s7 + $0x8] sm:$0xff] %vm50, %v189
  // Predicated region
  $region30: #{ponart_forward.12} parent=0 // pred_check
    _
  $region31: #{ponart_forward.12} parent=0 // pred_check_branch
    %193 = sbr.rel (0) target = $region33
  $region32: #{ponart_forward.12} parent=0 // pred_region
    _
  $region33: #{ponart_forward.12} parent=0 // pred_fallthru
    _
  // Predicated region
  $region34: #{ponart_forward.12} parent=0 // pred_check
    _
  $region35: #{ponart_forward.12} parent=0 // pred_check_branch
    %195 = sbr.rel (0) target = $region37
  $region36: #{ponart_forward.12} parent=0 // pred_region
    _
  $region37: #{ponart_forward.12} parent=0 // pred_fallthru
    _

// kernel: ponart_forward.17
$region0: #{ponart_forward.17}
  #allocation0 [shape = 'u32[]', space=smem, size = 0x4, offset = 0x4, fixed_abs, tag = 'smem constant byte address 0x4 - core index']
  #allocation1 [shape = 'u32[72,128]{1,0:T(1,128)}', space=vmem, size = 0x9000, scoped, tag = 'internal scratch']
  %s0 = inlined_call_operand.vmem [shape: bf16[16,32], index: 0, kind: input, shape index: {}]
  %s1 = inlined_call_operand.vmem [shape: bf16[32,128], index: 1, kind: input, shape index: {}]
  %s2 = inlined_call_operand.vmem [shape: f32[1,128], index: 2, kind: input, shape index: {}]
  %s3 = inlined_call_operand.hbm [shape: f32[16,128], index: 3, kind: output, shape index: {}]
  %s4 = sld [smem:[#allocation0]]
  $region22: #{ponart_forward.17} parent=0
    _
  %s6 = ssub.s32 1, %s4
  %s7 = scalar_select 0, %s6, %s4
  $region1: #{ponart_forward.17} parent=0
    #allocation2 [shape = 'u8[8192]{0}', space=vmem, size = 0x2000, scoped, tag = 'output window, operand 0, single buffered']
    #allocation3 [shape = 's32[1]{0}', space=sflag, size = 0x4, scoped, tag = 'scoped memory for ponart_forward.17']
    %8 = vsyncpa [#allocation3], 0
    // Predicated region
    $region2: #{ponart_forward.17} parent=1 // pred_check
      _
    $region3: #{ponart_forward.17} parent=1 // pred_check_branch
      %10 = sbr.rel (0) target = $region5
    $region4: #{ponart_forward.17} parent=1 // pred_region
      _
    $region5: #{ponart_forward.17} parent=1 // pred_fallthru
      _
    // Predicated region
    $region6: #{ponart_forward.17} parent=1 // pred_check
      _
    $region7: #{ponart_forward.17} parent=1 // pred_check_branch
      %12 = sbr.rel (0) target = $region9
    $region8: #{ponart_forward.17} parent=1 // pred_region
      _
    $region9: #{ponart_forward.17} parent=1 // pred_fallthru
      _
    // Predicated region
    $region10: #{ponart_forward.17} parent=1 // pred_check
      _
    $region11: #{ponart_forward.17} parent=1 // pred_check_branch
      %14 = sbr.rel (0) target = $region13
    $region12: #{ponart_forward.17} parent=1 // pred_region
      _
    $region13: #{ponart_forward.17} parent=1 // pred_fallthru
      _
    %v16 = vld [vmem:[%s0] sm:$0xf]
    %v17 = vld [vmem:[%s0 + $0x4] sm:$0xf]
    %v18 = vld [vmem:[%s1] sm:$0xf]
    %v19 = vld [vmem:[%s1 + $0x4] sm:$0xf]
    %v20 = vld [vmem:[%s1 + $0x8] sm:$0xf]
    %v21 = vld [vmem:[%s1 + $0xc] sm:$0xf]
    %v22 = vld [vmem:[%s2] sm:$0x1]
    %v24 = vperm.slane %v22, 0
    %v28 = vunpack.c.l.b16 %v16
    %v29 = vunpack.c.l.b16 %v17
    %v30 = vpack.c.b16 %v29, %v28
    %v35 = vunpack.c.l.b16 %v18
    %v36 = vunpack.c.l.b16 %v19
    %v37 = vunpack.c.l.b16 %v20
    %v38 = vunpack.c.l.b16 %v21
    %v39 = vpack.c.b16 %v36, %v35
    %v40 = vpack.c.b16 %v38, %v37
    %vm43 = vcmask 261120
    %v45 = vsel %vm43, %v30, 0
    %47 = vmatpush.bf16.msra.mxu0 0
    %48 = vmatpush.bf16.msra.mxu0 0
    %49 = vmatpush.bf16.msra.mxu0 0
    %50 = vmatpush.bf16.msra.mxu0 0
    %51 = vmatpush.bf16.msra.mxu0 0
    %52 = vmatpush.bf16.msra.mxu0 0
    %53 = vmatpush.bf16.msra.mxu0 %v40
    %54 = vmatpush.bf16.msra.mxu0 %v39
    %55 = vmatmul.bf16.gmra.mxu0 %v45
    %v56 = vpop.f32.mrf.mxu0
    %v57 = vadd.f32 %v24, %v56
    %v58 = vpop.f32.mrf.mxu0
    %v59 = vadd.f32 %v24, %v58
    %60 = vdwg.mxu0
    %61 = vst [vmem:[#allocation2] sm:$0xff] %v57
    %62 = vst [vmem:[#allocation2 + $0x8] sm:$0xff] %v59
    // Predicated region
    $region14: #{ponart_forward.17} parent=1 // pred_check
      _
    $region15: #{ponart_forward.17} parent=1 // pred_check_branch
      %64 = sbr.rel (0) target = $region17
    $region16: #{ponart_forward.17} parent=1 // pred_region
      %66 = vsyncadd [#allocation3], 0
      %s67 = sshll.u32 [#allocation2], 4
      %s68 = int_to_ptr.vmem [resolvable:$true] %s67
      %s69 = sshll.u32 %s3, 4
      %s70 = int_to_ptr.hbm [resolvable:$true] %s69
      %75 = dma.vmem_to_hbm [thread:$0]  %s68, 256, %s70, [#allocation3], 128, 128, 8
    $region17: #{ponart_forward.17} parent=1 // pred_fallthru
      _
    // Predicated region
    $region18: #{ponart_forward.17} parent=1 // pred_check
      _
    $region19: #{ponart_forward.17} parent=1 // pred_check_branch
      %77 = sbr.rel (0) target = $region21
    $region20: #{ponart_forward.17} parent=1 // pred_region
      %79 = dma.done [#allocation3], 256
    $region21: #{ponart_forward.17} parent=1 // pred_fallthru
      _
    %80 = vsyncpa [#allocation3], 1

</llo_original>
